<compile_context>
chip_gen: v7x
topology: tpu7x:2x2x1
jax: 0.10.0
libtpu: 0.0.40
codegen_flags: <defaults>
</compile_context>

<pallas_src>
import functools

import jax
import jax.numpy as jnp
import numpy as np
from jax.experimental import pallas as pl
from jax.experimental.pallas import tpu as pltpu

EPS = 1e-5


def _round_up(x, m):
    return (x + m - 1) // m * m


def _vmem_budget_bytes():
    """Generation-aware scoped-VMEM budget with a safe fallback."""
    cap = 128 * 2 ** 20
    try:
        info_fn = getattr(pltpu, "get_tpu_info", None)
        if info_fn is not None:
            cap = int(getattr(info_fn(), "vmem_capacity_bytes", cap))
    except Exception:
        pass
    # Stay well under the per-core ceiling: ~48 MiB on 64 MiB parts (v7x),
    # up to ~96 MiB on 128 MiB parts (v5e / v6e).
    return int(min(cap * 3 // 4, 96 * 2 ** 20))


# --------------------------- pass 1: conv + BN partial stats -----------------
def conv_stats_kernel(lhs_ref, w_ref, conv_ref, stats_ref):
    """One row tile of the convolution as a single MXU contraction.

    lhs_ref:   (T1, KP)  bf16  im2col'd input rows (zero-padded)
    w_ref:     (KP, CP)  bf16  conv taps, (kh,kw,cin) x cout (zero-padded)
    conv_ref:  (T1, CP)  bf16  raw conv output for this tile
    stats_ref: (8, CP)   f32   row 0 = per-channel sum, row 1 = sum of squares
    """
    acc = jnp.dot(lhs_ref[...], w_ref[...], preferred_element_type=jnp.float32)
    conv_ref[...] = acc.astype(conv_ref.dtype)
    # BN partials come from the f32 accumulator (not the bf16 store).
    stats_ref[...] = jnp.zeros_like(stats_ref)
    stats_ref[pl.ds(0, 1), :] = jnp.sum(acc, axis=0, keepdims=True)
    stats_ref[pl.ds(1, 1), :] = jnp.sum(acc * acc, axis=0, keepdims=True)


# --------------------------- pass 2: normalize + ReLU ------------------------
def bn_relu_kernel(conv_ref, scale_ref, shift_ref, out_ref):
    """y = relu(conv * scale + shift); scale/shift = folded train-mode BN."""
    x = conv_ref[...].astype(jnp.float32)
    out_ref[...] = jnp.maximum(x * scale_ref[...] + shift_ref[...], 0.0)


@functools.partial(jax.jit, static_argnames=("padding",))
def conv_block_forward(x_nchw, w_oihw, gamma, beta, *, padding=1):
    """PyTorch-equivalent ConvBlock.forward (stride=1, training-mode BN)."""
    N, Cin, H, W = x_nchw.shape
    Cout, _, KH, KW = w_oihw.shape

    # ---- im2col in bf16 so the kernel body is one jnp.dot per tile ----------
    x = jnp.transpose(x_nchw, (0, 2, 3, 1)).astype(jnp.bfloat16)       # NHWC
    x = jnp.pad(x, ((0, 0), (padding, padding), (padding, padding), (0, 0)))
    cols = [x[:, kh:kh + H, kw:kw + W, :]
            for kh in range(KH) for kw in range(KW)]
    patches = jnp.stack(cols, axis=3)              # (N, H, W, KH*KW, Cin) bf16

    rows = N * H * W
    K = KH * KW * Cin
    KP = _round_up(K, 16)        # bf16 sublane packing only -- NOT 128
    if Cout >= 192 and _round_up(Cout, 256) <= (5 * _round_up(Cout, 128)) // 4:
        CP = _round_up(Cout, 256)     # fill the 256-wide MXU on v6e / v7x
    else:
        CP = _round_up(Cout, 128)     # lane-dense channels

    # ---- generation-aware tile sizing ---------------------------------------
    budget = _vmem_budget_bytes()
    # pass-1 per-row bytes: bf16 lhs + bf16 conv out + f32 matmul accumulator
    p1_row = KP * 2 + CP * 2 + CP * 4
    p1_fixed = KP * CP * 2 + 8 * CP * 4
    t1 = 2048
    while t1 > 64 and 3 * t1 * p1_row + p1_fixed > budget:
        t1 //= 2
    num_tiles1 = -(-rows // t1)                                   # cdiv
    t1 = min(t1, _round_up(-(-rows // num_tiles1), 16))           # balance tiles
    rows_pad = num_tiles1 * t1

    # pass-2 epilogue rows are cheap; use a bigger tile that divides rows_pad.
    p2_row = CP * 2 + CP * 4
    t2, num_tiles2 = t1, num_tiles1
    for d in (8, 4, 2):
        if num_tiles1 % d == 0 and 3 * d * t1 * p2_row < budget and d * t1 <= 8192:
            t2, num_tiles2 = d * t1, num_tiles1 // d
            break

    vmem_limit = int(min(budget,
                         max(16 * 2 ** 20,
                             2 * (2 * t1 * p1_row + p1_fixed),
                             4 * t2 * p2_row)))

    lhs = patches.reshape(rows, K)
    lhs = jnp.pad(lhs, ((0, rows_pad - rows), (0, KP - K)))        # stays bf16

    w = jnp.transpose(w_oihw, (2, 3, 1, 0)).reshape(K, Cout)
    w = jnp.pad(w, ((0, KP - K), (0, CP - Cout))).astype(jnp.bfloat16)

    gamma_p = jnp.pad(gamma.astype(jnp.float32).reshape(Cout), (0, CP - Cout))
    beta_p = jnp.pad(beta.astype(jnp.float32).reshape(Cout), (0, CP - Cout))

    # NOTE: weight spec has a constant index_map so the (KP, CP) taps stay
    # resident; lhs/out tiles are double-buffered by the BlockSpec pipeline.
    # (pipeline_mode=pl.Buffered(3) on lhs is a further knob if profiling shows
    # exposed DMA once tiles are this large.)
    conv_out, stats = pl.pallas_call(
        conv_stats_kernel,
        out_shape=(jax.ShapeDtypeStruct((rows_pad, CP), jnp.bfloat16),
                   jax.ShapeDtypeStruct((num_tiles1 * 8, CP), jnp.float32)),
        grid=(num_tiles1,),
        in_specs=[pl.BlockSpec((t1, KP), lambda i: (i, 0)),
                  pl.BlockSpec((KP, CP), lambda i: (0, 0))],
        out_specs=(pl.BlockSpec((t1, CP), lambda i: (i, 0)),
                   pl.BlockSpec((8, CP), lambda i: (i, 0))),
        compiler_params=pltpu.CompilerParams(
            dimension_semantics=("parallel",),
            vmem_limit_bytes=vmem_limit),
    )(lhs, w)

    # ---- fold train-mode BN (biased batch stats) into one scale/shift -------
    tot = stats.reshape(num_tiles1, 8, CP)[:, :2, :].sum(axis=0)   # (2, CP)
    s1, s2 = tot[0], tot[1]
    count = float(rows)          # zero-padded rows contribute 0 to s1/s2
    mean = s1 / count
    var = jnp.maximum(s2 / count - mean * mean, 0.0)
    inv = jax.lax.rsqrt(var + EPS)
    scale = (gamma_p * inv).reshape(1, CP)
    shift = (beta_p - mean * gamma_p * inv).reshape(1, CP)

    out2d = pl.pallas_call(
        bn_relu_kernel,
        out_shape=jax.ShapeDtypeStruct((rows_pad, CP), jnp.float32),
        grid=(num_tiles2,),
        in_specs=[pl.BlockSpec((t2, CP), lambda i: (i, 0)),
                  pl.BlockSpec((1, CP), lambda i: (0, 0)),
                  pl.BlockSpec((1, CP), lambda i: (0, 0))],
        out_specs=pl.BlockSpec((t2, CP), lambda i: (i, 0)),
        compiler_params=pltpu.CompilerParams(
            dimension_semantics=("parallel",),
            vmem_limit_bytes=vmem_limit),
    )(conv_out, scale, shift)

    # Zero-padded rows emerge from pass 2 as relu(shift) (intentional -- they
    # are sliced away here); padded channels are exactly zero.
    # TODO(synk): an NHWC consumer could take out2d[:rows, :Cout] directly and
    # skip this final NCHW transpose round trip.
    out = out2d[:rows, :Cout].reshape(N, H, W, Cout)
    return jnp.transpose(out, (0, 3, 1, 2))                       # back to NCHW


def reference_forward(x_nchw, w_oihw, gamma, beta, padding=1):
    """Pure-JAX f32 reference matching PyTorch ConvBlock.forward (train BN)."""
    out = jax.lax.conv_general_dilated(
        x_nchw, w_oihw, window_strides=(1, 1),
        padding=((padding, padding), (padding, padding)),
        dimension_numbers=("NCHW", "OIHW", "NCHW"))
    mean = out.mean(axis=(0, 2, 3), keepdims=True)
    var = ((out - mean) ** 2).mean(axis=(0, 2, 3), keepdims=True)
    y = (out - mean) * jax.lax.rsqrt(var + EPS)
    y = y * gamma.reshape(1, -1, 1, 1) + beta.reshape(1, -1, 1, 1)
    return jnp.maximum(y, 0.0)


if __name__ == "__main__":
    key = jax.random.PRNGKey(0)
    kx, kw = jax.random.split(key)

    N, Cin, Cout, H, W = 2, 4, 8, 16, 16
    KH, KW = 3, 3

    x = jax.random.normal(kx, (N, Cin, H, W), dtype=jnp.float32)
    # Conv weight: deterministic Kaiming-ish init (nn.Conv2d style scale).
    fan_in = Cin * KH * KW
    w = jax.random.normal(kw, (Cout, Cin, KH, KW),
                          dtype=jnp.float32) / jnp.sqrt(fan_in)
    # BatchNorm2d default affine init: gamma=1, beta=0.
    gamma = jnp.ones((Cout,), dtype=jnp.float32)
    beta = jnp.zeros((Cout,), dtype=jnp.float32)

    out = conv_block_forward(x, w, gamma, beta, padding=1)
    out = jax.block_until_ready(out)

    ref = reference_forward(x, w, gamma, beta, padding=1)
    # bf16 MXU inputs + bf16 conv intermediate (f32 accumulation, f32 BN
    # epilogue) => slightly looser tolerance; semantics are unchanged.
    np.testing.assert_allclose(np.asarray(out), np.asarray(ref),
                               atol=3e-2, rtol=3e-2)

    print("KERNEL_OK")
</pallas_src>

<mosaic_0001>
module attributes {stable_mosaic.version = 11 : i64} {
  func.func @conv_stats_kernel(%arg0: i32, %arg1: memref<512x48xbf16, #tpu.memory_space<vmem>>, %arg2: memref<48x128xbf16, #tpu.memory_space<vmem>>, %arg3: memref<512x128xbf16, #tpu.memory_space<vmem>>, %arg4: memref<8x128xf32, #tpu.memory_space<vmem>>) attributes {dimension_semantics = [#tpu.dimension_semantics<parallel>], iteration_bounds = array<i64: 1>, scalar_prefetch = 0 : i64, scratch_operands = 0 : i64, tpu.core_type = #tpu.core_type<tc>, window_params = [{transform_indices = @transform_0, window_bounds = array<i64: 512, 48>}, {pipeline_mode = #tpu.pipeline_mode<synchronous>, transform_indices = @transform_1, window_bounds = array<i64: 48, 128>}, {transform_indices = @transform_2, window_bounds = array<i64: 512, 128>}, {transform_indices = @transform_3, window_bounds = array<i64: 8, 128>}]} {
    %c0 = arith.constant 0 : index
    %c0_0 = arith.constant 0 : index
    %0 = vector.load %arg1[%c0, %c0_0] : memref<512x48xbf16, #tpu.memory_space<vmem>>, vector<512x48xbf16>
    %c0_1 = arith.constant 0 : index
    %c0_2 = arith.constant 0 : index
    %1 = vector.load %arg2[%c0_1, %c0_2] : memref<48x128xbf16, #tpu.memory_space<vmem>>, vector<48x128xbf16>
    %cst = arith.constant dense<0.000000e+00> : vector<512x128xf32>
    %2 = tpu.matmul %0, %1, %cst {dimension_numbers = #tpu.dot_dimension_numbers<[1], [0], [0], [1], [0, 0, 1, 1], [], []>} : vector<512x48xbf16>, vector<48x128xbf16>, vector<512x128xf32> -> vector<512x128xf32>
    %3 = arith.truncf %2 : vector<512x128xf32> to vector<512x128xbf16>
    %c0_3 = arith.constant 0 : index
    %c0_4 = arith.constant 0 : index
    %4 = vector.load %arg3[%c0_3, %c0_4] : memref<512x128xbf16, #tpu.memory_space<vmem>>, vector<512x128xbf16>
    tpu.vector_store %arg3[%c0_3, %c0_4], %3 {strides = array<i32>} : memref<512x128xbf16, #tpu.memory_space<vmem>>, vector<512x128xbf16>,
    %cst_5 = arith.constant 0.000000e+00 : f32
    %5 = vector.broadcast %cst_5 : f32 to vector<8x128xf32>
    %c0_6 = arith.constant 0 : index
    %c0_7 = arith.constant 0 : index
    %6 = vector.load %arg4[%c0_6, %c0_7] : memref<8x128xf32, #tpu.memory_space<vmem>>, vector<8x128xf32>
    tpu.vector_store %arg4[%c0_6, %c0_7], %5 {strides = array<i32>} : memref<8x128xf32, #tpu.memory_space<vmem>>, vector<8x128xf32>,
    %cst_8 = arith.constant dense<0.000000e+00> : vector<128xf32>
    %7 = vector.multi_reduction <add>, %2, %cst_8 [0] : vector<512x128xf32> to vector<128xf32>
    %8 = vector.shape_cast %7 : vector<128xf32> to vector<1x128xf32>
    %c0_9 = arith.constant 0 : index
    %c0_10 = arith.constant 0 : index
    %9 = vector.load %arg4[%c0_9, %c0_10] : memref<8x128xf32, #tpu.memory_space<vmem>>, vector<1x128xf32>
    tpu.vector_store %arg4[%c0_9, %c0_10], %8 {strides = array<i32>} : memref<8x128xf32, #tpu.memory_space<vmem>>, vector<1x128xf32>,
    %10 = arith.mulf %2, %2 : vector<512x128xf32>
    %cst_11 = arith.constant dense<0.000000e+00> : vector<128xf32>
    %11 = vector.multi_reduction <add>, %10, %cst_11 [0] : vector<512x128xf32> to vector<128xf32>
    %12 = vector.shape_cast %11 : vector<128xf32> to vector<1x128xf32>
    %c1 = arith.constant 1 : index
    %c0_12 = arith.constant 0 : index
    %13 = vector.load %arg4[%c1, %c0_12] : memref<8x128xf32, #tpu.memory_space<vmem>>, vector<1x128xf32>
    tpu.vector_store %arg4[%c1, %c0_12], %12 {strides = array<i32>} : memref<8x128xf32, #tpu.memory_space<vmem>>, vector<1x128xf32>,
    return
  }
  func.func @transform_0(%arg0: i32) -> (i32, i32) {
    %c0_i32 = arith.constant 0 : i32
    %c0_i32_0 = arith.constant 0 : i32
    return %arg0, %c0_i32 : i32, i32
  }
  func.func @transform_1(%arg0: i32) -> (i32, i32) {
    %c0_i32 = arith.constant 0 : i32
    %c0_i32_0 = arith.constant 0 : i32
    %c0_i32_1 = arith.constant 0 : i32
    return %c0_i32, %c0_i32_0 : i32, i32
  }
  func.func @transform_2(%arg0: i32) -> (i32, i32) {
    %c0_i32 = arith.constant 0 : i32
    %c0_i32_0 = arith.constant 0 : i32
    return %arg0, %c0_i32 : i32, i32
  }
  func.func @transform_3(%arg0: i32) -> (i32, i32) {
    %c0_i32 = arith.constant 0 : i32
    %c0_i32_0 = arith.constant 0 : i32
    return %arg0, %c0_i32 : i32, i32
  }
}

module attributes {stable_mosaic.version = 11 : i64} {
  func.func @bn_relu_kernel(%arg0: i32, %arg1: memref<512x128xbf16, #tpu.memory_space<vmem>>, %arg2: memref<1x128xf32, #tpu.memory_space<vmem>>, %arg3: memref<1x128xf32, #tpu.memory_space<vmem>>, %arg4: memref<512x128xf32, #tpu.memory_space<vmem>>) attributes {dimension_semantics = [#tpu.dimension_semantics<parallel>], iteration_bounds = array<i64: 1>, scalar_prefetch = 0 : i64, scratch_operands = 0 : i64, tpu.core_type = #tpu.core_type<tc>, window_params = [{transform_indices = @transform_0, window_bounds = array<i64: 512, 128>}, {pipeline_mode = #tpu.pipeline_mode<synchronous>, transform_indices = @transform_1, window_bounds = array<i64: 1, 128>}, {pipeline_mode = #tpu.pipeline_mode<synchronous>, transform_indices = @transform_2, window_bounds = array<i64: 1, 128>}, {transform_indices = @transform_3, window_bounds = array<i64: 512, 128>}]} {
    %c0 = arith.constant 0 : index
    %c0_0 = arith.constant 0 : index
    %0 = vector.load %arg1[%c0, %c0_0] : memref<512x128xbf16, #tpu.memory_space<vmem>>, vector<512x128xbf16>
    %1 = arith.extf %0 : vector<512x128xbf16> to vector<512x128xf32>
    %c0_1 = arith.constant 0 : index
    %c0_2 = arith.constant 0 : index
    %2 = vector.load %arg2[%c0_1, %c0_2] : memref<1x128xf32, #tpu.memory_space<vmem>>, vector<1x128xf32>
    %3 = vector.broadcast %2 : vector<1x128xf32> to vector<512x128xf32>
    %4 = arith.mulf %1, %3 : vector<512x128xf32>
    %c0_3 = arith.constant 0 : index
    %c0_4 = arith.constant 0 : index
    %5 = vector.load %arg3[%c0_3, %c0_4] : memref<1x128xf32, #tpu.memory_space<vmem>>, vector<1x128xf32>
    %6 = vector.broadcast %5 : vector<1x128xf32> to vector<512x128xf32>
    %7 = arith.addf %4, %6 : vector<512x128xf32>
    %cst = arith.constant 0.000000e+00 : f32
    %8 = vector.broadcast %cst : f32 to vector<512x128xf32>
    %9 = arith.maximumf %7, %8 : vector<512x128xf32>
    %c0_5 = arith.constant 0 : index
    %c0_6 = arith.constant 0 : index
    %10 = vector.load %arg4[%c0_5, %c0_6] : memref<512x128xf32, #tpu.memory_space<vmem>>, vector<512x128xf32>
    tpu.vector_store %arg4[%c0_5, %c0_6], %9 {strides = array<i32>} : memref<512x128xf32, #tpu.memory_space<vmem>>, vector<512x128xf32>,
    return
  }
  func.func @transform_0(%arg0: i32) -> (i32, i32) {
    %c0_i32 = arith.constant 0 : i32
    %c0_i32_0 = arith.constant 0 : i32
    return %arg0, %c0_i32 : i32, i32
  }
  func.func @transform_1(%arg0: i32) -> (i32, i32) {
    %c0_i32 = arith.constant 0 : i32
    %c0_i32_0 = arith.constant 0 : i32
    %c0_i32_1 = arith.constant 0 : i32
    return %c0_i32, %c0_i32_0 : i32, i32
  }
  func.func @transform_2(%arg0: i32) -> (i32, i32) {
    %c0_i32 = arith.constant 0 : i32
    %c0_i32_0 = arith.constant 0 : i32
    %c0_i32_1 = arith.constant 0 : i32
    return %c0_i32, %c0_i32_0 : i32, i32
  }
  func.func @transform_3(%arg0: i32) -> (i32, i32) {
    %c0_i32 = arith.constant 0 : i32
    %c0_i32_0 = arith.constant 0 : i32
    return %arg0, %c0_i32 : i32, i32
  }
}

</mosaic_0001>

<llo_original>
// kernel: conv_block_forward.3
$region0: #{conv_block_forward.3}
  #allocation0 [shape = 'u32[]', space=smem, size = 0x4, offset = 0x4, fixed_abs, tag = 'smem constant byte address 0x4 - core index']
  #allocation1 [shape = 'u32[144,128]{1,0:T(1,128)}', space=vmem, size = 0x12000, scoped, tag = 'internal scratch']
  %s0 = inlined_call_operand.vmem [shape: bf16[512,128], index: 0, kind: input, shape index: {}]
  %s1 = inlined_call_operand.vmem [shape: f32[1,128], index: 1, kind: input, shape index: {}]
  %s2 = inlined_call_operand.vmem [shape: f32[1,128], index: 2, kind: input, shape index: {}]
  %s3 = inlined_call_operand.vmem [shape: f32[512,128], index: 3, kind: output, shape index: {}]
  %s4 = sld [smem:[#allocation0]]
  $region22: #{conv_block_forward.3} parent=0
    _
  %s6 = ssub.s32 1, %s4
  %s7 = scalar_select 0, %s6, %s4
  // Predicated region
  $region2: #{conv_block_forward.3} parent=0 // pred_check
    _
  $region3: #{conv_block_forward.3} parent=0 // pred_check_branch
    %9 = sbr.rel (0) target = $region5
  $region4: #{conv_block_forward.3} parent=0 // pred_region
    _
  $region5: #{conv_block_forward.3} parent=0 // pred_fallthru
    _
  // Predicated region
  $region6: #{conv_block_forward.3} parent=0 // pred_check
    _
  $region7: #{conv_block_forward.3} parent=0 // pred_check_branch
    %11 = sbr.rel (0) target = $region9
  $region8: #{conv_block_forward.3} parent=0 // pred_region
    _
  $region9: #{conv_block_forward.3} parent=0 // pred_fallthru
    _
  // Predicated region
  $region10: #{conv_block_forward.3} parent=0 // pred_check
    _
  $region11: #{conv_block_forward.3} parent=0 // pred_check_branch
    %13 = sbr.rel (0) target = $region13
  $region12: #{conv_block_forward.3} parent=0 // pred_region
    _
  $region13: #{conv_block_forward.3} parent=0 // pred_fallthru
    _
  %v14 = vld [vmem:[%s0] sm:$0xf]
  %v15 = vld [vmem:[%s0 + $0x4] sm:$0xf]
  %v16 = vld [vmem:[%s0 + $0x8] sm:$0xf]
  %v17 = vld [vmem:[%s0 + $0xc] sm:$0xf]
  %v18 = vld [vmem:[%s0 + $0x10] sm:$0xf]
  %v19 = vld [vmem:[%s0 + $0x14] sm:$0xf]
  %v20 = vld [vmem:[%s0 + $0x18] sm:$0xf]
  %v21 = vld [vmem:[%s0 + $0x1c] sm:$0xf]
  %v22 = vld [vmem:[%s0 + $0x20] sm:$0xf]
  %v23 = vld [vmem:[%s0 + $0x24] sm:$0xf]
  %v24 = vld [vmem:[%s0 + $0x28] sm:$0xf]
  %v25 = vld [vmem:[%s0 + $0x2c] sm:$0xf]
  %v26 = vld [vmem:[%s0 + $0x30] sm:$0xf]
  %v27 = vld [vmem:[%s0 + $0x34] sm:$0xf]
  %v28 = vld [vmem:[%s0 + $0x38] sm:$0xf]
  %v29 = vld [vmem:[%s0 + $0x3c] sm:$0xf]
  %v30 = vld [vmem:[%s0 + $0x40] sm:$0xf]
  %v31 = vld [vmem:[%s0 + $0x44] sm:$0xf]
  %v32 = vld [vmem:[%s0 + $0x48] sm:$0xf]
  %v33 = vld [vmem:[%s0 + $0x4c] sm:$0xf]
  %v34 = vld [vmem:[%s0 + $0x50] sm:$0xf]
  %v35 = vld [vmem:[%s0 + $0x54] sm:$0xf]
  %v36 = vld [vmem:[%s0 + $0x58] sm:$0xf]
  %v37 = vld [vmem:[%s0 + $0x5c] sm:$0xf]
  %v38 = vld [vmem:[%s0 + $0x60] sm:$0xf]
  %v39 = vld [vmem:[%s0 + $0x64] sm:$0xf]
  %v40 = vld [vmem:[%s0 + $0x68] sm:$0xf]
  %v41 = vld [vmem:[%s0 + $0x6c] sm:$0xf]
  %v42 = vld [vmem:[%s0 + $0x70] sm:$0xf]
  %v43 = vld [vmem:[%s0 + $0x74] sm:$0xf]
  %v44 = vld [vmem:[%s0 + $0x78] sm:$0xf]
  %v45 = vld [vmem:[%s0 + $0x7c] sm:$0xf]
  %v46 = vld [vmem:[%s0 + $0x80] sm:$0xf]
  %v47 = vld [vmem:[%s0 + $0x84] sm:$0xf]
  %v48 = vld [vmem:[%s0 + $0x88] sm:$0xf]
  %v49 = vld [vmem:[%s0 + $0x8c] sm:$0xf]
  %v50 = vld [vmem:[%s0 + $0x90] sm:$0xf]
  %v51 = vld [vmem:[%s0 + $0x94] sm:$0xf]
  %v52 = vld [vmem:[%s0 + $0x98] sm:$0xf]
  %v53 = vld [vmem:[%s0 + $0x9c] sm:$0xf]
  %v54 = vld [vmem:[%s0 + $0xa0] sm:$0xf]
  %v55 = vld [vmem:[%s0 + $0xa4] sm:$0xf]
  %v56 = vld [vmem:[%s0 + $0xa8] sm:$0xf]
  %v57 = vld [vmem:[%s0 + $0xac] sm:$0xf]
  %v58 = vld [vmem:[%s0 + $0xb0] sm:$0xf]
  %v59 = vld [vmem:[%s0 + $0xb4] sm:$0xf]
  %v60 = vld [vmem:[%s0 + $0xb8] sm:$0xf]
  %v61 = vld [vmem:[%s0 + $0xbc] sm:$0xf]
  %v62 = vld [vmem:[%s0 + $0xc0] sm:$0xf]
  %v63 = vld [vmem:[%s0 + $0xc4] sm:$0xf]
  %v64 = vld [vmem:[%s0 + $0xc8] sm:$0xf]
  %v65 = vld [vmem:[%s0 + $0xcc] sm:$0xf]
  %v66 = vld [vmem:[%s0 + $0xd0] sm:$0xf]
  %v67 = vld [vmem:[%s0 + $0xd4] sm:$0xf]
  %v68 = vld [vmem:[%s0 + $0xd8] sm:$0xf]
  %v69 = vld [vmem:[%s0 + $0xdc] sm:$0xf]
  %v70 = vld [vmem:[%s0 + $0xe0] sm:$0xf]
  %v71 = vld [vmem:[%s0 + $0xe4] sm:$0xf]
  %v72 = vld [vmem:[%s0 + $0xe8] sm:$0xf]
  %v73 = vld [vmem:[%s0 + $0xec] sm:$0xf]
  %v74 = vld [vmem:[%s0 + $0xf0] sm:$0xf]
  %v75 = vld [vmem:[%s0 + $0xf4] sm:$0xf]
  %v76 = vld [vmem:[%s0 + $0xf8] sm:$0xf]
  %v77 = vld [vmem:[%s0 + $0xfc] sm:$0xf]
  %v78 = vunpack.c.l.bf16 %v14
  %v79 = vunpack.c.l.bf16 %v15
  %v80 = vunpack.c.l.bf16 %v16
  %v81 = vunpack.c.l.bf16 %v17
  %v82 = vunpack.c.l.bf16 %v18
  %v83 = vunpack.c.l.bf16 %v19
  %v84 = vunpack.c.l.bf16 %v20
  %v85 = vunpack.c.l.bf16 %v21
  %v86 = vunpack.c.l.bf16 %v22
  %v87 = vunpack.c.l.bf16 %v23
  %v88 = vunpack.c.l.bf16 %v24
  %v89 = vunpack.c.l.bf16 %v25
  %v90 = vunpack.c.l.bf16 %v26
  %v91 = vunpack.c.l.bf16 %v27
  %v92 = vunpack.c.l.bf16 %v28
  %v93 = vunpack.c.l.bf16 %v29
  %v94 = vunpack.c.l.bf16 %v30
  %v95 = vunpack.c.l.bf16 %v31
  %v96 = vunpack.c.l.bf16 %v32
  %v97 = vunpack.c.l.bf16 %v33
  %v98 = vunpack.c.l.bf16 %v34
  %v99 = vunpack.c.l.bf16 %v35
  %v100 = vunpack.c.l.bf16 %v36
  %v101 = vunpack.c.l.bf16 %v37
  %v102 = vunpack.c.l.bf16 %v38
  %v103 = vunpack.c.l.bf16 %v39
  %v104 = vunpack.c.l.bf16 %v40
  %v105 = vunpack.c.l.bf16 %v41
  %v106 = vunpack.c.l.bf16 %v42
  %v107 = vunpack.c.l.bf16 %v43
  %v108 = vunpack.c.l.bf16 %v44
  %v109 = vunpack.c.l.bf16 %v45
  %v110 = vunpack.c.l.bf16 %v46
  %v111 = vunpack.c.l.bf16 %v47
  %v112 = vunpack.c.l.bf16 %v48
  %v113 = vunpack.c.l.bf16 %v49
  %v114 = vunpack.c.l.bf16 %v50
  %v115 = vunpack.c.l.bf16 %v51
  %v116 = vunpack.c.l.bf16 %v52
  %v117 = vunpack.c.l.bf16 %v53
  %v118 = vunpack.c.l.bf16 %v54
  %v119 = vunpack.c.l.bf16 %v55
  %v120 = vunpack.c.l.bf16 %v56
  %v121 = vunpack.c.l.bf16 %v57
  %v122 = vunpack.c.l.bf16 %v58
  %v123 = vunpack.c.l.bf16 %v59
  %v124 = vunpack.c.l.bf16 %v60
  %v125 = vunpack.c.l.bf16 %v61
  %v126 = vunpack.c.l.bf16 %v62
  %v127 = vunpack.c.l.bf16 %v63
  %v128 = vunpack.c.l.bf16 %v64
  %v129 = vunpack.c.l.bf16 %v65
  %v130 = vunpack.c.l.bf16 %v66
  %v131 = vunpack.c.l.bf16 %v67
  %v132 = vunpack.c.l.bf16 %v68
  %v133 = vunpack.c.l.bf16 %v69
  %v134 = vunpack.c.l.bf16 %v70
  %v135 = vunpack.c.l.bf16 %v71
  %v136 = vunpack.c.l.bf16 %v72
  %v137 = vunpack.c.l.bf16 %v73
  %v138 = vunpack.c.l.bf16 %v74
  %v139 = vunpack.c.l.bf16 %v75
  %v140 = vunpack.c.l.bf16 %v76
  %v141 = vunpack.c.l.bf16 %v77
  %v142 = vld [vmem:[%s1] sm:$0x1]
  %v144 = vlaneseq
  %v145 = vshrl.u32 %v144, 7
  %v146 = vsub.s32 0, %v145
  %v147 = vrot.slane %v142, %v146
  %v149 = vmul.f32 %v78, %v147
  %v150 = vmul.f32 %v79, %v147
  %v151 = vmul.f32 %v80, %v147
  %v152 = vmul.f32 %v81, %v147
  %v153 = vmul.f32 %v82, %v147
  %v154 = vmul.f32 %v83, %v147
  %v155 = vmul.f32 %v84, %v147
  %v156 = vmul.f32 %v85, %v147
  %v157 = vmul.f32 %v86, %v147
  %v158 = vmul.f32 %v87, %v147
  %v159 = vmul.f32 %v88, %v147
  %v160 = vmul.f32 %v89, %v147
  %v161 = vmul.f32 %v90, %v147
  %v162 = vmul.f32 %v91, %v147
  %v163 = vmul.f32 %v92, %v147
  %v164 = vmul.f32 %v93, %v147
  %v165 = vmul.f32 %v94, %v147
  %v166 = vmul.f32 %v95, %v147
  %v167 = vmul.f32 %v96, %v147
  %v168 = vmul.f32 %v97, %v147
  %v169 = vmul.f32 %v98, %v147
  %v170 = vmul.f32 %v99, %v147
  %v171 = vmul.f32 %v100, %v147
  %v172 = vmul.f32 %v101, %v147
  %v173 = vmul.f32 %v102, %v147
  %v174 = vmul.f32 %v103, %v147
  %v175 = vmul.f32 %v104, %v147
  %v176 = vmul.f32 %v105, %v147
  %v177 = vmul.f32 %v106, %v147
  %v178 = vmul.f32 %v107, %v147
  %v179 = vmul.f32 %v108, %v147
  %v180 = vmul.f32 %v109, %v147
  %v181 = vmul.f32 %v110, %v147
  %v182 = vmul.f32 %v111, %v147
  %v183 = vmul.f32 %v112, %v147
  %v184 = vmul.f32 %v113, %v147
  %v185 = vmul.f32 %v114, %v147
  %v186 = vmul.f32 %v115, %v147
  %v187 = vmul.f32 %v116, %v147
  %v188 = vmul.f32 %v117, %v147
  %v189 = vmul.f32 %v118, %v147
  %v190 = vmul.f32 %v119, %v147
  %v191 = vmul.f32 %v120, %v147
  %v192 = vmul.f32 %v121, %v147
  %v193 = vmul.f32 %v122, %v147
  %v194 = vmul.f32 %v123, %v147
  %v195 = vmul.f32 %v124, %v147
  %v196 = vmul.f32 %v125, %v147
  %v197 = vmul.f32 %v126, %v147
  %v198 = vmul.f32 %v127, %v147
  %v199 = vmul.f32 %v128, %v147
  %v200 = vmul.f32 %v129, %v147
  %v201 = vmul.f32 %v130, %v147
  %v202 = vmul.f32 %v131, %v147
  %v203 = vmul.f32 %v132, %v147
  %v204 = vmul.f32 %v133, %v147
  %v205 = vmul.f32 %v134, %v147
  %v206 = vmul.f32 %v135, %v147
  %v207 = vmul.f32 %v136, %v147
  %v208 = vmul.f32 %v137, %v147
  %v209 = vmul.f32 %v138, %v147
  %v210 = vmul.f32 %v139, %v147
  %v211 = vmul.f32 %v140, %v147
  %v212 = vmul.f32 %v141, %v147
  %v213 = vld [vmem:[%s2] sm:$0x1]
  %v215 = vlaneseq
  %v216 = vshrl.u32 %v215, 7
  %v217 = vsub.s32 0, %v216
  %v218 = vrot.slane %v213, %v217
  %v220 = vadd.f32 %v149, %v218
  %v221 = vadd.f32 %v150, %v218
  %v222 = vadd.f32 %v151, %v218
  %v223 = vadd.f32 %v152, %v218
  %v224 = vadd.f32 %v153, %v218
  %v225 = vadd.f32 %v154, %v218
  %v226 = vadd.f32 %v155, %v218
  %v227 = vadd.f32 %v156, %v218
  %v228 = vadd.f32 %v157, %v218
  %v229 = vadd.f32 %v158, %v218
  %v230 = vadd.f32 %v159, %v218
  %v231 = vadd.f32 %v160, %v218
  %v232 = vadd.f32 %v161, %v218
  %v233 = vadd.f32 %v162, %v218
  %v234 = vadd.f32 %v163, %v218
  %v235 = vadd.f32 %v164, %v218
  %v236 = vadd.f32 %v165, %v218
  %v237 = vadd.f32 %v166, %v218
  %v238 = vadd.f32 %v167, %v218
  %v239 = vadd.f32 %v168, %v218
  %v240 = vadd.f32 %v169, %v218
  %v241 = vadd.f32 %v170, %v218
  %v242 = vadd.f32 %v171, %v218
  %v243 = vadd.f32 %v172, %v218
  %v244 = vadd.f32 %v173, %v218
  %v245 = vadd.f32 %v174, %v218
  %v246 = vadd.f32 %v175, %v218
  %v247 = vadd.f32 %v176, %v218
  %v248 = vadd.f32 %v177, %v218
  %v249 = vadd.f32 %v178, %v218
  %v250 = vadd.f32 %v179, %v218
  %v251 = vadd.f32 %v180, %v218
  %v252 = vadd.f32 %v181, %v218
  %v253 = vadd.f32 %v182, %v218
  %v254 = vadd.f32 %v183, %v218
  %v255 = vadd.f32 %v184, %v218
  %v256 = vadd.f32 %v185, %v218
  %v257 = vadd.f32 %v186, %v218
  %v258 = vadd.f32 %v187, %v218
  %v259 = vadd.f32 %v188, %v218
  %v260 = vadd.f32 %v189, %v218
  %v261 = vadd.f32 %v190, %v218
  %v262 = vadd.f32 %v191, %v218
  %v263 = vadd.f32 %v192, %v218
  %v264 = vadd.f32 %v193, %v218
  %v265 = vadd.f32 %v194, %v218
  %v266 = vadd.f32 %v195, %v218
  %v267 = vadd.f32 %v196, %v218
  %v268 = vadd.f32 %v197, %v218
  %v269 = vadd.f32 %v198, %v218
  %v270 = vadd.f32 %v199, %v218
  %v271 = vadd.f32 %v200, %v218
  %v272 = vadd.f32 %v201, %v218
  %v273 = vadd.f32 %v202, %v218
  %v274 = vadd.f32 %v203, %v218
  %v275 = vadd.f32 %v204, %v218
  %v276 = vadd.f32 %v205, %v218
  %v277 = vadd.f32 %v206, %v218
  %v278 = vadd.f32 %v207, %v218
  %v279 = vadd.f32 %v208, %v218
  %v280 = vadd.f32 %v209, %v218
  %v281 = vadd.f32 %v210, %v218
  %v282 = vadd.f32 %v211, %v218
  %v283 = vadd.f32 %v212, %v218
  %v284 = vmax.f32 %v220, 0.0
  %v285 = vmax.f32 %v221, 0.0
  %v286 = vmax.f32 %v222, 0.0
  %v287 = vmax.f32 %v223, 0.0
  %v288 = vmax.f32 %v224, 0.0
  %v289 = vmax.f32 %v225, 0.0
  %v290 = vmax.f32 %v226, 0.0
  %v291 = vmax.f32 %v227, 0.0
  %v292 = vmax.f32 %v228, 0.0
  %v293 = vmax.f32 %v229, 0.0
  %v294 = vmax.f32 %v230, 0.0
  %v295 = vmax.f32 %v231, 0.0
  %v296 = vmax.f32 %v232, 0.0
  %v297 = vmax.f32 %v233, 0.0
  %v298 = vmax.f32 %v234, 0.0
  %v299 = vmax.f32 %v235, 0.0
  %v300 = vmax.f32 %v236, 0.0
  %v301 = vmax.f32 %v237, 0.0
  %v302 = vmax.f32 %v238, 0.0
  %v303 = vmax.f32 %v239, 0.0
  %v304 = vmax.f32 %v240, 0.0
  %v305 = vmax.f32 %v241, 0.0
  %v306 = vmax.f32 %v242, 0.0
  %v307 = vmax.f32 %v243, 0.0
  %v308 = vmax.f32 %v244, 0.0
  %v309 = vmax.f32 %v245, 0.0
  %v310 = vmax.f32 %v246, 0.0
  %v311 = vmax.f32 %v247, 0.0
  %v312 = vmax.f32 %v248, 0.0
  %v313 = vmax.f32 %v249, 0.0
  %v314 = vmax.f32 %v250, 0.0
  %v315 = vmax.f32 %v251, 0.0
  %v316 = vmax.f32 %v252, 0.0
  %v317 = vmax.f32 %v253, 0.0
  %v318 = vmax.f32 %v254, 0.0
  %v319 = vmax.f32 %v255, 0.0
  %v320 = vmax.f32 %v256, 0.0
  %v321 = vmax.f32 %v257, 0.0
  %v322 = vmax.f32 %v258, 0.0
  %v323 = vmax.f32 %v259, 0.0
  %v324 = vmax.f32 %v260, 0.0
  %v325 = vmax.f32 %v261, 0.0
  %v326 = vmax.f32 %v262, 0.0
  %v327 = vmax.f32 %v263, 0.0
  %v328 = vmax.f32 %v264, 0.0
  %v329 = vmax.f32 %v265, 0.0
  %v330 = vmax.f32 %v266, 0.0
  %v331 = vmax.f32 %v267, 0.0
  %v332 = vmax.f32 %v268, 0.0
  %v333 = vmax.f32 %v269, 0.0
  %v334 = vmax.f32 %v270, 0.0
  %v335 = vmax.f32 %v271, 0.0
  %v336 = vmax.f32 %v272, 0.0
  %v337 = vmax.f32 %v273, 0.0
  %v338 = vmax.f32 %v274, 0.0
  %v339 = vmax.f32 %v275, 0.0
  %v340 = vmax.f32 %v276, 0.0
  %v341 = vmax.f32 %v277, 0.0
  %v342 = vmax.f32 %v278, 0.0
  %v343 = vmax.f32 %v279, 0.0
  %v344 = vmax.f32 %v280, 0.0
  %v345 = vmax.f32 %v281, 0.0
  %v346 = vmax.f32 %v282, 0.0
  %v347 = vmax.f32 %v283, 0.0
  %348 = vst [vmem:[%s3] sm:$0xff] %v284
  %349 = vst [vmem:[%s3 + $0x8] sm:$0xff] %v285
  %350 = vst [vmem:[%s3 + $0x10] sm:$0xff] %v286
  %351 = vst [vmem:[%s3 + $0x18] sm:$0xff] %v287
  %352 = vst [vmem:[%s3 + $0x20] sm:$0xff] %v288
  %353 = vst [vmem:[%s3 + $0x28] sm:$0xff] %v289
  %354 = vst [vmem:[%s3 + $0x30] sm:$0xff] %v290
  %355 = vst [vmem:[%s3 + $0x38] sm:$0xff] %v291
  %356 = vst [vmem:[%s3 + $0x40] sm:$0xff] %v292
  %357 = vst [vmem:[%s3 + $0x48] sm:$0xff] %v293
  %358 = vst [vmem:[%s3 + $0x50] sm:$0xff] %v294
  %359 = vst [vmem:[%s3 + $0x58] sm:$0xff] %v295
  %360 = vst [vmem:[%s3 + $0x60] sm:$0xff] %v296
  %361 = vst [vmem:[%s3 + $0x68] sm:$0xff] %v297
  %362 = vst [vmem:[%s3 + $0x70] sm:$0xff] %v298
  %363 = vst [vmem:[%s3 + $0x78] sm:$0xff] %v299
  %364 = vst [vmem:[%s3 + $0x80] sm:$0xff] %v300
  %365 = vst [vmem:[%s3 + $0x88] sm:$0xff] %v301
  %366 = vst [vmem:[%s3 + $0x90] sm:$0xff] %v302
  %367 = vst [vmem:[%s3 + $0x98] sm:$0xff] %v303
  %368 = vst [vmem:[%s3 + $0xa0] sm:$0xff] %v304
  %369 = vst [vmem:[%s3 + $0xa8] sm:$0xff] %v305
  %370 = vst [vmem:[%s3 + $0xb0] sm:$0xff] %v306
  %371 = vst [vmem:[%s3 + $0xb8] sm:$0xff] %v307
  %372 = vst [vmem:[%s3 + $0xc0] sm:$0xff] %v308
  %373 = vst [vmem:[%s3 + $0xc8] sm:$0xff] %v309
  %374 = vst [vmem:[%s3 + $0xd0] sm:$0xff] %v310
  %375 = vst [vmem:[%s3 + $0xd8] sm:$0xff] %v311
  %376 = vst [vmem:[%s3 + $0xe0] sm:$0xff] %v312
  %377 = vst [vmem:[%s3 + $0xe8] sm:$0xff] %v313
  %378 = vst [vmem:[%s3 + $0xf0] sm:$0xff] %v314
  %379 = vst [vmem:[%s3 + $0xf8] sm:$0xff] %v315
  %380 = vst [vmem:[%s3 + $0x100] sm:$0xff] %v316
  %381 = vst [vmem:[%s3 + $0x108] sm:$0xff] %v317
  %382 = vst [vmem:[%s3 + $0x110] sm:$0xff] %v318
  %383 = vst [vmem:[%s3 + $0x118] sm:$0xff] %v319
  %384 = vst [vmem:[%s3 + $0x120] sm:$0xff] %v320
  %385 = vst [vmem:[%s3 + $0x128] sm:$0xff] %v321
  %386 = vst [vmem:[%s3 + $0x130] sm:$0xff] %v322
  %387 = vst [vmem:[%s3 + $0x138] sm:$0xff] %v323
  %388 = vst [vmem:[%s3 + $0x140] sm:$0xff] %v324
  %389 = vst [vmem:[%s3 + $0x148] sm:$0xff] %v325
  %390 = vst [vmem:[%s3 + $0x150] sm:$0xff] %v326
  %391 = vst [vmem:[%s3 + $0x158] sm:$0xff] %v327
  %392 = vst [vmem:[%s3 + $0x160] sm:$0xff] %v328
  %393 = vst [vmem:[%s3 + $0x168] sm:$0xff] %v329
  %394 = vst [vmem:[%s3 + $0x170] sm:$0xff] %v330
  %395 = vst [vmem:[%s3 + $0x178] sm:$0xff] %v331
  %396 = vst [vmem:[%s3 + $0x180] sm:$0xff] %v332
  %397 = vst [vmem:[%s3 + $0x188] sm:$0xff] %v333
  %398 = vst [vmem:[%s3 + $0x190] sm:$0xff] %v334
  %399 = vst [vmem:[%s3 + $0x198] sm:$0xff] %v335
  %400 = vst [vmem:[%s3 + $0x1a0] sm:$0xff] %v336
  %401 = vst [vmem:[%s3 + $0x1a8] sm:$0xff] %v337
  %402 = vst [vmem:[%s3 + $0x1b0] sm:$0xff] %v338
  %403 = vst [vmem:[%s3 + $0x1b8] sm:$0xff] %v339
  %404 = vst [vmem:[%s3 + $0x1c0] sm:$0xff] %v340
  %405 = vst [vmem:[%s3 + $0x1c8] sm:$0xff] %v341
  %406 = vst [vmem:[%s3 + $0x1d0] sm:$0xff] %v342
  %407 = vst [vmem:[%s3 + $0x1d8] sm:$0xff] %v343
  %408 = vst [vmem:[%s3 + $0x1e0] sm:$0xff] %v344
  %409 = vst [vmem:[%s3 + $0x1e8] sm:$0xff] %v345
  %410 = vst [vmem:[%s3 + $0x1f0] sm:$0xff] %v346
  %411 = vst [vmem:[%s3 + $0x1f8] sm:$0xff] %v347
  // Predicated region
  $region14: #{conv_block_forward.3} parent=0 // pred_check
    _
  $region15: #{conv_block_forward.3} parent=0 // pred_check_branch
    %413 = sbr.rel (0) target = $region17
  $region16: #{conv_block_forward.3} parent=0 // pred_region
    _
  $region17: #{conv_block_forward.3} parent=0 // pred_fallthru
    _
  // Predicated region
  $region18: #{conv_block_forward.3} parent=0 // pred_check
    _
  $region19: #{conv_block_forward.3} parent=0 // pred_check_branch
    %415 = sbr.rel (0) target = $region21
  $region20: #{conv_block_forward.3} parent=0 // pred_region
    _
  $region21: #{conv_block_forward.3} parent=0 // pred_fallthru
    _

// kernel: conv_block_forward.2
$region0: #{conv_block_forward.2}
  #allocation0 [shape = 'u32[]', space=smem, size = 0x4, offset = 0x4, fixed_abs, tag = 'smem constant byte address 0x4 - core index']
  #allocation1 [shape = 'u32[144,128]{1,0:T(1,128)}', space=vmem, size = 0x12000, scoped, tag = 'internal scratch']
  %s0 = inlined_call_operand.vmem [shape: bf16[512,48], index: 0, kind: input, shape index: {}]
  %s1 = inlined_call_operand.vmem [shape: bf16[48,128], index: 1, kind: input, shape index: {}]
  %s2 = inlined_call_operand.vmem [shape: bf16[512,128], index: 2, kind: output, shape index: {0}]
  %s3 = inlined_call_operand.vmem [shape: f32[8,128], index: 3, kind: output, shape index: {1}]
  %4 = xla_tuple %s2, %s3
  %s5 = sld [smem:[#allocation0]]
  $region26: #{conv_block_forward.2} parent=0
    _
  %s7 = ssub.s32 1, %s5
  %s8 = scalar_select 0, %s7, %s5
  // Predicated region
  $region2: #{conv_block_forward.2} parent=0 // pred_check
    _
  $region3: #{conv_block_forward.2} parent=0 // pred_check_branch
    %10 = sbr.rel (0) target = $region5
  $region4: #{conv_block_forward.2} parent=0 // pred_region
    _
  $region5: #{conv_block_forward.2} parent=0 // pred_fallthru
    _
  // Predicated region
  $region6: #{conv_block_forward.2} parent=0 // pred_check
    _
  $region7: #{conv_block_forward.2} parent=0 // pred_check_branch
    %12 = sbr.rel (0) target = $region9
  $region8: #{conv_block_forward.2} parent=0 // pred_region
    _
  $region9: #{conv_block_forward.2} parent=0 // pred_fallthru
    _
  %v14 = vld [vmem:[%s0] sm:$0xf]
  %v15 = vld [vmem:[%s0 + $0x4] sm:$0xf]
  %v16 = vld [vmem:[%s0 + $0x8] sm:$0xf]
  %v17 = vld [vmem:[%s0 + $0xc] sm:$0xf]
  %v18 = vld [vmem:[%s0 + $0x10] sm:$0xf]
  %v19 = vld [vmem:[%s0 + $0x14] sm:$0xf]
  %v20 = vld [vmem:[%s0 + $0x18] sm:$0xf]
  %v21 = vld [vmem:[%s0 + $0x1c] sm:$0xf]
  %v22 = vld [vmem:[%s0 + $0x20] sm:$0xf]
  %v23 = vld [vmem:[%s0 + $0x24] sm:$0xf]
  %v24 = vld [vmem:[%s0 + $0x28] sm:$0xf]
  %v25 = vld [vmem:[%s0 + $0x2c] sm:$0xf]
  %v26 = vld [vmem:[%s0 + $0x30] sm:$0xf]
  %v27 = vld [vmem:[%s0 + $0x34] sm:$0xf]
  %v28 = vld [vmem:[%s0 + $0x38] sm:$0xf]
  %v29 = vld [vmem:[%s0 + $0x3c] sm:$0xf]
  %v30 = vld [vmem:[%s0 + $0x40] sm:$0xf]
  %v31 = vld [vmem:[%s0 + $0x44] sm:$0xf]
  %v32 = vld [vmem:[%s0 + $0x48] sm:$0xf]
  %v33 = vld [vmem:[%s0 + $0x4c] sm:$0xf]
  %v34 = vld [vmem:[%s0 + $0x50] sm:$0xf]
  %v35 = vld [vmem:[%s0 + $0x54] sm:$0xf]
  %v36 = vld [vmem:[%s0 + $0x58] sm:$0xf]
  %v37 = vld [vmem:[%s0 + $0x5c] sm:$0xf]
  %v38 = vld [vmem:[%s0 + $0x60] sm:$0xf]
  %v39 = vld [vmem:[%s0 + $0x64] sm:$0xf]
  %v40 = vld [vmem:[%s0 + $0x68] sm:$0xf]
  %v41 = vld [vmem:[%s0 + $0x6c] sm:$0xf]
  %v42 = vld [vmem:[%s0 + $0x70] sm:$0xf]
  %v43 = vld [vmem:[%s0 + $0x74] sm:$0xf]
  %v44 = vld [vmem:[%s0 + $0x78] sm:$0xf]
  %v45 = vld [vmem:[%s0 + $0x7c] sm:$0xf]
  %v46 = vld [vmem:[%s0 + $0x80] sm:$0xf]
  %v47 = vld [vmem:[%s0 + $0x84] sm:$0xf]
  %v48 = vld [vmem:[%s0 + $0x88] sm:$0xf]
  %v49 = vld [vmem:[%s0 + $0x8c] sm:$0xf]
  %v50 = vld [vmem:[%s0 + $0x90] sm:$0xf]
  %v51 = vld [vmem:[%s0 + $0x94] sm:$0xf]
  %v52 = vld [vmem:[%s0 + $0x98] sm:$0xf]
  %v53 = vld [vmem:[%s0 + $0x9c] sm:$0xf]
  %v54 = vld [vmem:[%s0 + $0xa0] sm:$0xf]
  %v55 = vld [vmem:[%s0 + $0xa4] sm:$0xf]
  %v56 = vld [vmem:[%s0 + $0xa8] sm:$0xf]
  %v57 = vld [vmem:[%s0 + $0xac] sm:$0xf]
  %v58 = vld [vmem:[%s0 + $0xb0] sm:$0xf]
  %v59 = vld [vmem:[%s0 + $0xb4] sm:$0xf]
  %v60 = vld [vmem:[%s0 + $0xb8] sm:$0xf]
  %v61 = vld [vmem:[%s0 + $0xbc] sm:$0xf]
  %v62 = vld [vmem:[%s0 + $0xc0] sm:$0xf]
  %v63 = vld [vmem:[%s0 + $0xc4] sm:$0xf]
  %v64 = vld [vmem:[%s0 + $0xc8] sm:$0xf]
  %v65 = vld [vmem:[%s0 + $0xcc] sm:$0xf]
  %v66 = vld [vmem:[%s0 + $0xd0] sm:$0xf]
  %v67 = vld [vmem:[%s0 + $0xd4] sm:$0xf]
  %v68 = vld [vmem:[%s0 + $0xd8] sm:$0xf]
  %v69 = vld [vmem:[%s0 + $0xdc] sm:$0xf]
  %v70 = vld [vmem:[%s0 + $0xe0] sm:$0xf]
  %v71 = vld [vmem:[%s0 + $0xe4] sm:$0xf]
  %v72 = vld [vmem:[%s0 + $0xe8] sm:$0xf]
  %v73 = vld [vmem:[%s0 + $0xec] sm:$0xf]
  %v74 = vld [vmem:[%s0 + $0xf0] sm:$0xf]
  %v75 = vld [vmem:[%s0 + $0xf4] sm:$0xf]
  %v76 = vld [vmem:[%s0 + $0xf8] sm:$0xf]
  %v77 = vld [vmem:[%s0 + $0xfc] sm:$0xf]
  %v78 = vld [vmem:[%s1] sm:$0xf]
  %v79 = vld [vmem:[%s1 + $0x4] sm:$0xf]
  %v80 = vld [vmem:[%s1 + $0x8] sm:$0xf]
  %v81 = vld [vmem:[%s1 + $0xc] sm:$0xf]
  %v82 = vld [vmem:[%s1 + $0x10] sm:$0xf]
  %v83 = vld [vmem:[%s1 + $0x14] sm:$0xf]
  %v148 = vunpack.c.l.b16 %v14
  %v149 = vunpack.c.l.b16 %v15
  %v150 = vunpack.c.l.b16 %v16
  %v151 = vunpack.c.l.b16 %v17
  %v152 = vunpack.c.l.b16 %v18
  %v153 = vunpack.c.l.b16 %v19
  %v154 = vunpack.c.l.b16 %v20
  %v155 = vunpack.c.l.b16 %v21
  %v156 = vunpack.c.l.b16 %v22
  %v157 = vunpack.c.l.b16 %v23
  %v158 = vunpack.c.l.b16 %v24
  %v159 = vunpack.c.l.b16 %v25
  %v160 = vunpack.c.l.b16 %v26
  %v161 = vunpack.c.l.b16 %v27
  %v162 = vunpack.c.l.b16 %v28
  %v163 = vunpack.c.l.b16 %v29
  %v164 = vunpack.c.l.b16 %v30
  %v165 = vunpack.c.l.b16 %v31
  %v166 = vunpack.c.l.b16 %v32
  %v167 = vunpack.c.l.b16 %v33
  %v168 = vunpack.c.l.b16 %v34
  %v169 = vunpack.c.l.b16 %v35
  %v170 = vunpack.c.l.b16 %v36
  %v171 = vunpack.c.l.b16 %v37
  %v172 = vunpack.c.l.b16 %v38
  %v173 = vunpack.c.l.b16 %v39
  %v174 = vunpack.c.l.b16 %v40
  %v175 = vunpack.c.l.b16 %v41
  %v176 = vunpack.c.l.b16 %v42
  %v177 = vunpack.c.l.b16 %v43
  %v178 = vunpack.c.l.b16 %v44
  %v179 = vunpack.c.l.b16 %v45
  %v180 = vunpack.c.l.b16 %v46
  %v181 = vunpack.c.l.b16 %v47
  %v182 = vunpack.c.l.b16 %v48
  %v183 = vunpack.c.l.b16 %v49
  %v184 = vunpack.c.l.b16 %v50
  %v185 = vunpack.c.l.b16 %v51
  %v186 = vunpack.c.l.b16 %v52
  %v187 = vunpack.c.l.b16 %v53
  %v188 = vunpack.c.l.b16 %v54
  %v189 = vunpack.c.l.b16 %v55
  %v190 = vunpack.c.l.b16 %v56
  %v191 = vunpack.c.l.b16 %v57
  %v192 = vunpack.c.l.b16 %v58
  %v193 = vunpack.c.l.b16 %v59
  %v194 = vunpack.c.l.b16 %v60
  %v195 = vunpack.c.l.b16 %v61
  %v196 = vunpack.c.l.b16 %v62
  %v197 = vunpack.c.l.b16 %v63
  %v198 = vunpack.c.l.b16 %v64
  %v199 = vunpack.c.l.b16 %v65
  %v200 = vunpack.c.l.b16 %v66
  %v201 = vunpack.c.l.b16 %v67
  %v202 = vunpack.c.l.b16 %v68
  %v203 = vunpack.c.l.b16 %v69
  %v204 = vunpack.c.l.b16 %v70
  %v205 = vunpack.c.l.b16 %v71
  %v206 = vunpack.c.l.b16 %v72
  %v207 = vunpack.c.l.b16 %v73
  %v208 = vunpack.c.l.b16 %v74
  %v209 = vunpack.c.l.b16 %v75
  %v210 = vunpack.c.l.b16 %v76
  %v211 = vunpack.c.l.b16 %v77
  %v212 = vpack.c.b16 %v149, %v148
  %v213 = vpack.c.b16 %v151, %v150
  %v214 = vpack.c.b16 %v153, %v152
  %v215 = vpack.c.b16 %v155, %v154
  %v216 = vpack.c.b16 %v157, %v156
  %v217 = vpack.c.b16 %v159, %v158
  %v218 = vpack.c.b16 %v161, %v160
  %v219 = vpack.c.b16 %v163, %v162
  %v220 = vpack.c.b16 %v165, %v164
  %v221 = vpack.c.b16 %v167, %v166
  %v222 = vpack.c.b16 %v169, %v168
  %v223 = vpack.c.b16 %v171, %v170
  %v224 = vpack.c.b16 %v173, %v172
  %v225 = vpack.c.b16 %v175, %v174
  %v226 = vpack.c.b16 %v177, %v176
  %v227 = vpack.c.b16 %v179, %v178
  %v228 = vpack.c.b16 %v181, %v180
  %v229 = vpack.c.b16 %v183, %v182
  %v230 = vpack.c.b16 %v185, %v184
  %v231 = vpack.c.b16 %v187, %v186
  %v232 = vpack.c.b16 %v189, %v188
  %v233 = vpack.c.b16 %v191, %v190
  %v234 = vpack.c.b16 %v193, %v192
  %v235 = vpack.c.b16 %v195, %v194
  %v236 = vpack.c.b16 %v197, %v196
  %v237 = vpack.c.b16 %v199, %v198
  %v238 = vpack.c.b16 %v201, %v200
  %v239 = vpack.c.b16 %v203, %v202
  %v240 = vpack.c.b16 %v205, %v204
  %v241 = vpack.c.b16 %v207, %v206
  %v242 = vpack.c.b16 %v209, %v208
  %v243 = vpack.c.b16 %v211, %v210
  %v250 = vunpack.c.l.b16 %v78
  %v251 = vunpack.c.l.b16 %v79
  %v252 = vunpack.c.l.b16 %v80
  %v253 = vunpack.c.l.b16 %v81
  %v254 = vunpack.c.l.b16 %v82
  %v255 = vunpack.c.l.b16 %v83
  %v256 = vpack.c.b16 %v251, %v250
  %v257 = vpack.c.b16 %v253, %v252
  %v258 = vpack.c.b16 %v255, %v254
  %vm262 = vcmask 392192
  %v264 = vsel %vm262, %v212, 0
  %v267 = vsel %vm262, %v213, 0
  %v270 = vsel %vm262, %v214, 0
  %v273 = vsel %vm262, %v215, 0
  %v276 = vsel %vm262, %v216, 0
  %v279 = vsel %vm262, %v217, 0
  %v282 = vsel %vm262, %v218, 0
  %v285 = vsel %vm262, %v219, 0
  %v288 = vsel %vm262, %v220, 0
  %v291 = vsel %vm262, %v221, 0
  %v294 = vsel %vm262, %v222, 0
  %v297 = vsel %vm262, %v223, 0
  %v300 = vsel %vm262, %v224, 0
  %v303 = vsel %vm262, %v225, 0
  %v306 = vsel %vm262, %v226, 0
  %v309 = vsel %vm262, %v227, 0
  %v312 = vsel %vm262, %v228, 0
  %v315 = vsel %vm262, %v229, 0
  %v318 = vsel %vm262, %v230, 0
  %v321 = vsel %vm262, %v231, 0
  %v324 = vsel %vm262, %v232, 0
  %v327 = vsel %vm262, %v233, 0
  %v330 = vsel %vm262, %v234, 0
  %v333 = vsel %vm262, %v235, 0
  %v336 = vsel %vm262, %v236, 0
  %v339 = vsel %vm262, %v237, 0
  %v342 = vsel %vm262, %v238, 0
  %v345 = vsel %vm262, %v239, 0
  %v348 = vsel %vm262, %v240, 0
  %v351 = vsel %vm262, %v241, 0
  %v354 = vsel %vm262, %v242, 0
  %v357 = vsel %vm262, %v243, 0
  %359 = vmatprep.subr.bf16.mxu0 0
  %360 = vmatpush1.bf16.msra.mxu0 %v256
  %361 = vmatprep.subr.bf16.mxu0 0
  %362 = vmatpush1.bf16.msra.mxu0 %v257
  %363 = vmatprep.subr.bf16.mxu0 0
  %364 = vmatpush1.bf16.msra.mxu0 %v258
  %365 = vmatprep.subr.bf16.mxu0 0
  %366 = vmatpush1.bf16.msra.mxu0 0
  %367 = vmatprep.subr.bf16.mxu0 0
  %368 = vmatpush1.bf16.msra.mxu0 0
  %369 = vmatprep.subr.bf16.mxu0 0
  %370 = vmatpush1.bf16.msra.mxu0 0
  %371 = vmatprep.subr.bf16.mxu0 0
  %372 = vmatpush1.bf16.msra.mxu0 0
  %373 = vmatprep.subr.bf16.mxu0 0
  %374 = vmatpush1.bf16.msra.mxu0 0
  %375 = vmatprep.subr.bf16.mxu0 0
  %376 = vmatpush1.bf16.msra.mxu0 0
  %377 = vmatprep.subr.bf16.mxu0 0
  %378 = vmatpush1.bf16.msra.mxu0 0
  %379 = vmatprep.subr.bf16.mxu0 0
  %380 = vmatpush1.bf16.msra.mxu0 0
  %381 = vmatprep.subr.bf16.mxu0 0
  %382 = vmatpush1.bf16.msra.mxu0 0
  %383 = vmatprep.subr.bf16.mxu0 0
  %384 = vmatpush1.bf16.msra.mxu0 0
  %385 = vmatprep.subr.bf16.mxu0 0
  %386 = vmatpush1.bf16.msra.mxu0 0
  %387 = vmatprep.subr.bf16.mxu0 0
  %388 = vmatpush1.bf16.msra.mxu0 0
  %389 = vmatprep.subr.bf16.mxu0 0
  %390 = vmatpush1.bf16.msra.mxu0 0
  %391 = vmatprep.mubr.bf16.mxu0 0
  %392 = vmatmul.mubr.bf16.gmra.mrb[0].mxu0 %v264
  %v393 = vpop.f32.mrb[0].mxu0
  %v394 = vadd.f32 0.0, %v393
  %v395 = vpop.f32.mrb[0].mxu0
  %v396 = vpop.f32.mrb[0].mxu0
  %v397 = vadd.f32 0.0, %v396
  %v398 = vpop.f32.mrb[0].mxu0
  %399 = vmatprep.mubr.bf16.mxu0 0
  %400 = vmatmul.mubr.bf16.gmra.mrb[0].mxu0 %v267
  %v401 = vpop.f32.mrb[0].mxu0
  %v402 = vadd.f32 0.0, %v401
  %v403 = vpop.f32.mrb[0].mxu0
  %v404 = vpop.f32.mrb[0].mxu0
  %v405 = vadd.f32 0.0, %v404
  %v406 = vpop.f32.mrb[0].mxu0
  %407 = vmatprep.mubr.bf16.mxu0 0
  %408 = vmatmul.mubr.bf16.gmra.mrb[0].mxu0 %v270
  %v409 = vpop.f32.mrb[0].mxu0
  %v410 = vadd.f32 0.0, %v409
  %v411 = vpop.f32.mrb[0].mxu0
  %v412 = vpop.f32.mrb[0].mxu0
  %v413 = vadd.f32 0.0, %v412
  %v414 = vpop.f32.mrb[0].mxu0
  %415 = vmatprep.mubr.bf16.mxu0 0
  %416 = vmatmul.mubr.bf16.gmra.mrb[0].mxu0 %v273
  %v417 = vpop.f32.mrb[0].mxu0
  %v418 = vadd.f32 0.0, %v417
  %v419 = vpop.f32.mrb[0].mxu0
  %v420 = vpop.f32.mrb[0].mxu0
  %v421 = vadd.f32 0.0, %v420
  %v422 = vpop.f32.mrb[0].mxu0
  %423 = vmatprep.mubr.bf16.mxu0 0
  %424 = vmatmul.mubr.bf16.gmra.mrb[0].mxu0 %v276
  %v425 = vpop.f32.mrb[0].mxu0
  %v426 = vadd.f32 0.0, %v425
  %v427 = vpop.f32.mrb[0].mxu0
  %v428 = vpop.f32.mrb[0].mxu0
  %v429 = vadd.f32 0.0, %v428
  %v430 = vpop.f32.mrb[0].mxu0
  %431 = vmatprep.mubr.bf16.mxu0 0
  %432 = vmatmul.mubr.bf16.gmra.mrb[0].mxu0 %v279
  %v433 = vpop.f32.mrb[0].mxu0
  %v434 = vadd.f32 0.0, %v433
  %v435 = vpop.f32.mrb[0].mxu0
  %v436 = vpop.f32.mrb[0].mxu0
  %v437 = vadd.f32 0.0, %v436
  %v438 = vpop.f32.mrb[0].mxu0
  %439 = vmatprep.mubr.bf16.mxu0 0
  %440 = vmatmul.mubr.bf16.gmra.mrb[0].mxu0 %v282
  %v441 = vpop.f32.mrb[0].mxu0
  %v442 = vadd.f32 0.0, %v441
  %v443 = vpop.f32.mrb[0].mxu0
  %v444 = vpop.f32.mrb[0].mxu0
  %v445 = vadd.f32 0.0, %v444
  %v446 = vpop.f32.mrb[0].mxu0
  %447 = vmatprep.mubr.bf16.mxu0 0
  %448 = vmatmul.mubr.bf16.gmra.mrb[0].mxu0 %v285
  %v449 = vpop.f32.mrb[0].mxu0
  %v450 = vadd.f32 0.0, %v449
  %v451 = vpop.f32.mrb[0].mxu0
  %v452 = vpop.f32.mrb[0].mxu0
  %v453 = vadd.f32 0.0, %v452
  %v454 = vpop.f32.mrb[0].mxu0
  %455 = vmatprep.mubr.bf16.mxu0 0
  %456 = vmatmul.mubr.bf16.gmra.mrb[0].mxu0 %v288
  %v457 = vpop.f32.mrb[0].mxu0
  %v458 = vadd.f32 0.0, %v457
  %v459 = vpop.f32.mrb[0].mxu0
  %v460 = vpop.f32.mrb[0].mxu0
  %v461 = vadd.f32 0.0, %v460
  %v462 = vpop.f32.mrb[0].mxu0
  %463 = vmatprep.mubr.bf16.mxu0 0
  %464 = vmatmul.mubr.bf16.gmra.mrb[0].mxu0 %v291
  %v465 = vpop.f32.mrb[0].mxu0
  %v466 = vadd.f32 0.0, %v465
  %v467 = vpop.f32.mrb[0].mxu0
  %v468 = vpop.f32.mrb[0].mxu0
  %v469 = vadd.f32 0.0, %v468
  %v470 = vpop.f32.mrb[0].mxu0
  %471 = vmatprep.mubr.bf16.mxu0 0
  %472 = vmatmul.mubr.bf16.gmra.mrb[0].mxu0 %v294
  %v473 = vpop.f32.mrb[0].mxu0
  %v474 = vadd.f32 0.0, %v473
  %v475 = vpop.f32.mrb[0].mxu0
  %v476 = vpop.f32.mrb[0].mxu0
  %v477 = vadd.f32 0.0, %v476
  %v478 = vpop.f32.mrb[0].mxu0
  %479 = vmatprep.mubr.bf16.mxu0 0
  %480 = vmatmul.mubr.bf16.gmra.mrb[0].mxu0 %v297
  %v481 = vpop.f32.mrb[0].mxu0
  %v482 = vadd.f32 0.0, %v481
  %v483 = vpop.f32.mrb[0].mxu0
  %v484 = vpop.f32.mrb[0].mxu0
  %v485 = vadd.f32 0.0, %v484
  %v486 = vpop.f32.mrb[0].mxu0
  %487 = vmatprep.mubr.bf16.mxu0 0
  %488 = vmatmul.mubr.bf16.gmra.mrb[0].mxu0 %v300
  %v489 = vpop.f32.mrb[0].mxu0
  %v490 = vadd.f32 0.0, %v489
  %v491 = vpop.f32.mrb[0].mxu0
  %v492 = vpop.f32.mrb[0].mxu0
  %v493 = vadd.f32 0.0, %v492
  %v494 = vpop.f32.mrb[0].mxu0
  %495 = vmatprep.mubr.bf16.mxu0 0
  %496 = vmatmul.mubr.bf16.gmra.mrb[0].mxu0 %v303
  %v497 = vpop.f32.mrb[0].mxu0
  %v498 = vadd.f32 0.0, %v497
  %v499 = vpop.f32.mrb[0].mxu0
  %v500 = vpop.f32.mrb[0].mxu0
  %v501 = vadd.f32 0.0, %v500
  %v502 = vpop.f32.mrb[0].mxu0
  %503 = vmatprep.mubr.bf16.mxu0 0
  %504 = vmatmul.mubr.bf16.gmra.mrb[0].mxu0 %v306
  %v505 = vpop.f32.mrb[0].mxu0
  %v506 = vadd.f32 0.0, %v505
  %v507 = vpop.f32.mrb[0].mxu0
  %v508 = vpop.f32.mrb[0].mxu0
  %v509 = vadd.f32 0.0, %v508
  %v510 = vpop.f32.mrb[0].mxu0
  %511 = vmatprep.mubr.bf16.mxu0 0
  %512 = vmatmul.mubr.bf16.gmra.mrb[0].mxu0 %v309
  %v513 = vpop.f32.mrb[0].mxu0
  %v514 = vadd.f32 0.0, %v513
  %v515 = vpop.f32.mrb[0].mxu0
  %v516 = vpop.f32.mrb[0].mxu0
  %v517 = vadd.f32 0.0, %v516
  %v518 = vpop.f32.mrb[0].mxu0
  %519 = vmatprep.mubr.bf16.mxu0 0
  %520 = vmatmul.mubr.bf16.gmra.mrb[0].mxu0 %v312
  %v521 = vpop.f32.mrb[0].mxu0
  %v522 = vadd.f32 0.0, %v521
  %v523 = vpop.f32.mrb[0].mxu0
  %v524 = vpop.f32.mrb[0].mxu0
  %v525 = vadd.f32 0.0, %v524
  %v526 = vpop.f32.mrb[0].mxu0
  %527 = vmatprep.mubr.bf16.mxu0 0
  %528 = vmatmul.mubr.bf16.gmra.mrb[0].mxu0 %v315
  %v529 = vpop.f32.mrb[0].mxu0
  %v530 = vadd.f32 0.0, %v529
  %v531 = vpop.f32.mrb[0].mxu0
  %v532 = vpop.f32.mrb[0].mxu0
  %v533 = vadd.f32 0.0, %v532
  %v534 = vpop.f32.mrb[0].mxu0
  %535 = vmatprep.mubr.bf16.mxu0 0
  %536 = vmatmul.mubr.bf16.gmra.mrb[0].mxu0 %v318
  %v537 = vpop.f32.mrb[0].mxu0
  %v538 = vadd.f32 0.0, %v537
  %v539 = vpop.f32.mrb[0].mxu0
  %v540 = vpop.f32.mrb[0].mxu0
  %v541 = vadd.f32 0.0, %v540
  %v542 = vpop.f32.mrb[0].mxu0
  %543 = vmatprep.mubr.bf16.mxu0 0
  %544 = vmatmul.mubr.bf16.gmra.mrb[0].mxu0 %v321
  %v545 = vpop.f32.mrb[0].mxu0
  %v546 = vadd.f32 0.0, %v545
  %v547 = vpop.f32.mrb[0].mxu0
  %v548 = vpop.f32.mrb[0].mxu0
  %v549 = vadd.f32 0.0, %v548
  %v550 = vpop.f32.mrb[0].mxu0
  %551 = vmatprep.mubr.bf16.mxu0 0
  %552 = vmatmul.mubr.bf16.gmra.mrb[0].mxu0 %v324
  %v553 = vpop.f32.mrb[0].mxu0
  %v554 = vadd.f32 0.0, %v553
  %v555 = vpop.f32.mrb[0].mxu0
  %v556 = vpop.f32.mrb[0].mxu0
  %v557 = vadd.f32 0.0, %v556
  %v558 = vpop.f32.mrb[0].mxu0
  %559 = vmatprep.mubr.bf16.mxu0 0
  %560 = vmatmul.mubr.bf16.gmra.mrb[0].mxu0 %v327
  %v561 = vpop.f32.mrb[0].mxu0
  %v562 = vadd.f32 0.0, %v561
  %v563 = vpop.f32.mrb[0].mxu0
  %v564 = vpop.f32.mrb[0].mxu0
  %v565 = vadd.f32 0.0, %v564
  %v566 = vpop.f32.mrb[0].mxu0
  %567 = vmatprep.mubr.bf16.mxu0 0
  %568 = vmatmul.mubr.bf16.gmra.mrb[0].mxu0 %v330
  %v569 = vpop.f32.mrb[0].mxu0
  %v570 = vadd.f32 0.0, %v569
  %v571 = vpop.f32.mrb[0].mxu0
  %v572 = vpop.f32.mrb[0].mxu0
  %v573 = vadd.f32 0.0, %v572
  %v574 = vpop.f32.mrb[0].mxu0
  %575 = vmatprep.mubr.bf16.mxu0 0
  %576 = vmatmul.mubr.bf16.gmra.mrb[0].mxu0 %v333
  %v577 = vpop.f32.mrb[0].mxu0
  %v578 = vadd.f32 0.0, %v577
  %v579 = vpop.f32.mrb[0].mxu0
  %v580 = vpop.f32.mrb[0].mxu0
  %v581 = vadd.f32 0.0, %v580
  %v582 = vpop.f32.mrb[0].mxu0
  %583 = vmatprep.mubr.bf16.mxu0 0
  %584 = vmatmul.mubr.bf16.gmra.mrb[0].mxu0 %v336
  %v585 = vpop.f32.mrb[0].mxu0
  %v586 = vadd.f32 0.0, %v585
  %v587 = vpop.f32.mrb[0].mxu0
  %v588 = vpop.f32.mrb[0].mxu0
  %v589 = vadd.f32 0.0, %v588
  %v590 = vpop.f32.mrb[0].mxu0
  %591 = vmatprep.mubr.bf16.mxu0 0
  %592 = vmatmul.mubr.bf16.gmra.mrb[0].mxu0 %v339
  %v593 = vpop.f32.mrb[0].mxu0
  %v594 = vadd.f32 0.0, %v593
  %v595 = vpop.f32.mrb[0].mxu0
  %v596 = vpop.f32.mrb[0].mxu0
  %v597 = vadd.f32 0.0, %v596
  %v598 = vpop.f32.mrb[0].mxu0
  %599 = vmatprep.mubr.bf16.mxu0 0
  %600 = vmatmul.mubr.bf16.gmra.mrb[0].mxu0 %v342
  %v601 = vpop.f32.mrb[0].mxu0
  %v602 = vadd.f32 0.0, %v601
  %v603 = vpop.f32.mrb[0].mxu0
  %v604 = vpop.f32.mrb[0].mxu0
  %v605 = vadd.f32 0.0, %v604
  %v606 = vpop.f32.mrb[0].mxu0
  %607 = vmatprep.mubr.bf16.mxu0 0
  %608 = vmatmul.mubr.bf16.gmra.mrb[0].mxu0 %v345
  %v609 = vpop.f32.mrb[0].mxu0
  %v610 = vadd.f32 0.0, %v609
  %v611 = vpop.f32.mrb[0].mxu0
  %v612 = vpop.f32.mrb[0].mxu0
  %v613 = vadd.f32 0.0, %v612
  %v614 = vpop.f32.mrb[0].mxu0
  %615 = vmatprep.mubr.bf16.mxu0 0
  %616 = vmatmul.mubr.bf16.gmra.mrb[0].mxu0 %v348
  %v617 = vpop.f32.mrb[0].mxu0
  %v618 = vadd.f32 0.0, %v617
  %v619 = vpop.f32.mrb[0].mxu0
  %v620 = vpop.f32.mrb[0].mxu0
  %v621 = vadd.f32 0.0, %v620
  %v622 = vpop.f32.mrb[0].mxu0
  %623 = vmatprep.mubr.bf16.mxu0 0
  %624 = vmatmul.mubr.bf16.gmra.mrb[0].mxu0 %v351
  %v625 = vpop.f32.mrb[0].mxu0
  %v626 = vadd.f32 0.0, %v625
  %v627 = vpop.f32.mrb[0].mxu0
  %v628 = vpop.f32.mrb[0].mxu0
  %v629 = vadd.f32 0.0, %v628
  %v630 = vpop.f32.mrb[0].mxu0
  %631 = vmatprep.mubr.bf16.mxu0 0
  %632 = vmatmul.mubr.bf16.gmra.mrb[0].mxu0 %v354
  %v633 = vpop.f32.mrb[0].mxu0
  %v634 = vadd.f32 0.0, %v633
  %v635 = vpop.f32.mrb[0].mxu0
  %v636 = vpop.f32.mrb[0].mxu0
  %v637 = vadd.f32 0.0, %v636
  %v638 = vpop.f32.mrb[0].mxu0
  %639 = vmatprep.mubr.bf16.mxu0 0
  %640 = vmatmul.mubr.bf16.gmra.mrb[0].mxu0 %v357
  %v641 = vpop.f32.mrb[0].mxu0
  %v642 = vadd.f32 0.0, %v641
  %v643 = vpop.f32.mrb[0].mxu0
  %v644 = vpop.f32.mrb[0].mxu0
  %v645 = vadd.f32 0.0, %v644
  %v646 = vpop.f32.mrb[0].mxu0
  %647 = vdwg.mxu0
  %v648 = vpack.c.bf16 %v397, %v394
  %v649 = vpack.c.bf16 %v405, %v402
  %v650 = vpack.c.bf16 %v413, %v410
  %v651 = vpack.c.bf16 %v421, %v418
  %v652 = vpack.c.bf16 %v429, %v426
  %v653 = vpack.c.bf16 %v437, %v434
  %v654 = vpack.c.bf16 %v445, %v442
  %v655 = vpack.c.bf16 %v453, %v450
  %v656 = vpack.c.bf16 %v461, %v458
  %v657 = vpack.c.bf16 %v469, %v466
  %v658 = vpack.c.bf16 %v477, %v474
  %v659 = vpack.c.bf16 %v485, %v482
  %v660 = vpack.c.bf16 %v493, %v490
  %v661 = vpack.c.bf16 %v501, %v498
  %v662 = vpack.c.bf16 %v509, %v506
  %v663 = vpack.c.bf16 %v517, %v514
  %v664 = vpack.c.bf16 %v525, %v522
  %v665 = vpack.c.bf16 %v533, %v530
  %v666 = vpack.c.bf16 %v541, %v538
  %v667 = vpack.c.bf16 %v549, %v546
  %v668 = vpack.c.bf16 %v557, %v554
  %v669 = vpack.c.bf16 %v565, %v562
  %v670 = vpack.c.bf16 %v573, %v570
  %v671 = vpack.c.bf16 %v581, %v578
  %v672 = vpack.c.bf16 %v589, %v586
  %v673 = vpack.c.bf16 %v597, %v594
  %v674 = vpack.c.bf16 %v605, %v602
  %v675 = vpack.c.bf16 %v613, %v610
  %v676 = vpack.c.bf16 %v621, %v618
  %v677 = vpack.c.bf16 %v629, %v626
  %v678 = vpack.c.bf16 %v637, %v634
  %v679 = vpack.c.bf16 %v645, %v642
  %v712 = vunpack.c.l.b16 %v648
  %v713 = vunpack.c.h.b16 %v648
  %v714 = vunpack.c.l.b16 %v649
  %v715 = vunpack.c.h.b16 %v649
  %v716 = vunpack.c.l.b16 %v650
  %v717 = vunpack.c.h.b16 %v650
  %v718 = vunpack.c.l.b16 %v651
  %v719 = vunpack.c.h.b16 %v651
  %v720 = vunpack.c.l.b16 %v652
  %v721 = vunpack.c.h.b16 %v652
  %v722 = vunpack.c.l.b16 %v653
  %v723 = vunpack.c.h.b16 %v653
  %v724 = vunpack.c.l.b16 %v654
  %v725 = vunpack.c.h.b16 %v654
  %v726 = vunpack.c.l.b16 %v655
  %v727 = vunpack.c.h.b16 %v655
  %v728 = vunpack.c.l.b16 %v656
  %v729 = vunpack.c.h.b16 %v656
  %v730 = vunpack.c.l.b16 %v657
  %v731 = vunpack.c.h.b16 %v657
  %v732 = vunpack.c.l.b16 %v658
  %v733 = vunpack.c.h.b16 %v658
  %v734 = vunpack.c.l.b16 %v659
  %v735 = vunpack.c.h.b16 %v659
  %v736 = vunpack.c.l.b16 %v660
  %v737 = vunpack.c.h.b16 %v660
  %v738 = vunpack.c.l.b16 %v661
  %v739 = vunpack.c.h.b16 %v661
  %v740 = vunpack.c.l.b16 %v662
  %v741 = vunpack.c.h.b16 %v662
  %v742 = vunpack.c.l.b16 %v663
  %v743 = vunpack.c.h.b16 %v663
  %v744 = vunpack.c.l.b16 %v664
  %v745 = vunpack.c.h.b16 %v664
  %v746 = vunpack.c.l.b16 %v665
  %v747 = vunpack.c.h.b16 %v665
  %v748 = vunpack.c.l.b16 %v666
  %v749 = vunpack.c.h.b16 %v666
  %v750 = vunpack.c.l.b16 %v667
  %v751 = vunpack.c.h.b16 %v667
  %v752 = vunpack.c.l.b16 %v668
  %v753 = vunpack.c.h.b16 %v668
  %v754 = vunpack.c.l.b16 %v669
  %v755 = vunpack.c.h.b16 %v669
  %v756 = vunpack.c.l.b16 %v670
  %v757 = vunpack.c.h.b16 %v670
  %v758 = vunpack.c.l.b16 %v671
  %v759 = vunpack.c.h.b16 %v671
  %v760 = vunpack.c.l.b16 %v672
  %v761 = vunpack.c.h.b16 %v672
  %v762 = vunpack.c.l.b16 %v673
  %v763 = vunpack.c.h.b16 %v673
  %v764 = vunpack.c.l.b16 %v674
  %v765 = vunpack.c.h.b16 %v674
  %v766 = vunpack.c.l.b16 %v675
  %v767 = vunpack.c.h.b16 %v675
  %v768 = vunpack.c.l.b16 %v676
  %v769 = vunpack.c.h.b16 %v676
  %v770 = vunpack.c.l.b16 %v677
  %v771 = vunpack.c.h.b16 %v677
  %v772 = vunpack.c.l.b16 %v678
  %v773 = vunpack.c.h.b16 %v678
  %v774 = vunpack.c.l.b16 %v679
  %v775 = vunpack.c.h.b16 %v679
  %v776 = vpack.c.b16 %v712, %v712
  %v777 = vpack.c.b16 %v713, %v713
  %v778 = vpack.c.b16 %v714, %v714
  %v779 = vpack.c.b16 %v715, %v715
  %v780 = vpack.c.b16 %v716, %v716
  %v781 = vpack.c.b16 %v717, %v717
  %v782 = vpack.c.b16 %v718, %v718
  %v783 = vpack.c.b16 %v719, %v719
  %v784 = vpack.c.b16 %v720, %v720
  %v785 = vpack.c.b16 %v721, %v721
  %v786 = vpack.c.b16 %v722, %v722
  %v787 = vpack.c.b16 %v723, %v723
  %v788 = vpack.c.b16 %v724, %v724
  %v789 = vpack.c.b16 %v725, %v725
  %v790 = vpack.c.b16 %v726, %v726
  %v791 = vpack.c.b16 %v727, %v727
  %v792 = vpack.c.b16 %v728, %v728
  %v793 = vpack.c.b16 %v729, %v729
  %v794 = vpack.c.b16 %v730, %v730
  %v795 = vpack.c.b16 %v731, %v731
  %v796 = vpack.c.b16 %v732, %v732
  %v797 = vpack.c.b16 %v733, %v733
  %v798 = vpack.c.b16 %v734, %v734
  %v799 = vpack.c.b16 %v735, %v735
  %v800 = vpack.c.b16 %v736, %v736
  %v801 = vpack.c.b16 %v737, %v737
  %v802 = vpack.c.b16 %v738, %v738
  %v803 = vpack.c.b16 %v739, %v739
  %v804 = vpack.c.b16 %v740, %v740
  %v805 = vpack.c.b16 %v741, %v741
  %v806 = vpack.c.b16 %v742, %v742
  %v807 = vpack.c.b16 %v743, %v743
  %v808 = vpack.c.b16 %v744, %v744
  %v809 = vpack.c.b16 %v745, %v745
  %v810 = vpack.c.b16 %v746, %v746
  %v811 = vpack.c.b16 %v747, %v747
  %v812 = vpack.c.b16 %v748, %v748
  %v813 = vpack.c.b16 %v749, %v749
  %v814 = vpack.c.b16 %v750, %v750
  %v815 = vpack.c.b16 %v751, %v751
  %v816 = vpack.c.b16 %v752, %v752
  %v817 = vpack.c.b16 %v753, %v753
  %v818 = vpack.c.b16 %v754, %v754
  %v819 = vpack.c.b16 %v755, %v755
  %v820 = vpack.c.b16 %v756, %v756
  %v821 = vpack.c.b16 %v757, %v757
  %v822 = vpack.c.b16 %v758, %v758
  %v823 = vpack.c.b16 %v759, %v759
  %v824 = vpack.c.b16 %v760, %v760
  %v825 = vpack.c.b16 %v761, %v761
  %v826 = vpack.c.b16 %v762, %v762
  %v827 = vpack.c.b16 %v763, %v763
  %v828 = vpack.c.b16 %v764, %v764
  %v829 = vpack.c.b16 %v765, %v765
  %v830 = vpack.c.b16 %v766, %v766
  %v831 = vpack.c.b16 %v767, %v767
  %v832 = vpack.c.b16 %v768, %v768
  %v833 = vpack.c.b16 %v769, %v769
  %v834 = vpack.c.b16 %v770, %v770
  %v835 = vpack.c.b16 %v771, %v771
  %v836 = vpack.c.b16 %v772, %v772
  %v837 = vpack.c.b16 %v773, %v773
  %v838 = vpack.c.b16 %v774, %v774
  %v839 = vpack.c.b16 %v775, %v775
  %904 = vst [vmem:[%s2] sm:$0xf] %v776
  %905 = vst [vmem:[%s2 + $0x4] sm:$0xf] %v777
  %906 = vst [vmem:[%s2 + $0x8] sm:$0xf] %v778
  %907 = vst [vmem:[%s2 + $0xc] sm:$0xf] %v779
  %908 = vst [vmem:[%s2 + $0x10] sm:$0xf] %v780
  %909 = vst [vmem:[%s2 + $0x14] sm:$0xf] %v781
  %910 = vst [vmem:[%s2 + $0x18] sm:$0xf] %v782
  %911 = vst [vmem:[%s2 + $0x1c] sm:$0xf] %v783
  %912 = vst [vmem:[%s2 + $0x20] sm:$0xf] %v784
  %913 = vst [vmem:[%s2 + $0x24] sm:$0xf] %v785
  %914 = vst [vmem:[%s2 + $0x28] sm:$0xf] %v786
  %915 = vst [vmem:[%s2 + $0x2c] sm:$0xf] %v787
  %916 = vst [vmem:[%s2 + $0x30] sm:$0xf] %v788
  %917 = vst [vmem:[%s2 + $0x34] sm:$0xf] %v789
  %918 = vst [vmem:[%s2 + $0x38] sm:$0xf] %v790
  %919 = vst [vmem:[%s2 + $0x3c] sm:$0xf] %v791
  %920 = vst [vmem:[%s2 + $0x40] sm:$0xf] %v792
  %921 = vst [vmem:[%s2 + $0x44] sm:$0xf] %v793
  %922 = vst [vmem:[%s2 + $0x48] sm:$0xf] %v794
  %923 = vst [vmem:[%s2 + $0x4c] sm:$0xf] %v795
  %924 = vst [vmem:[%s2 + $0x50] sm:$0xf] %v796
  %925 = vst [vmem:[%s2 + $0x54] sm:$0xf] %v797
  %926 = vst [vmem:[%s2 + $0x58] sm:$0xf] %v798
  %927 = vst [vmem:[%s2 + $0x5c] sm:$0xf] %v799
  %928 = vst [vmem:[%s2 + $0x60] sm:$0xf] %v800
  %929 = vst [vmem:[%s2 + $0x64] sm:$0xf] %v801
  %930 = vst [vmem:[%s2 + $0x68] sm:$0xf] %v802
  %931 = vst [vmem:[%s2 + $0x6c] sm:$0xf] %v803
  %932 = vst [vmem:[%s2 + $0x70] sm:$0xf] %v804
  %933 = vst [vmem:[%s2 + $0x74] sm:$0xf] %v805
  %934 = vst [vmem:[%s2 + $0x78] sm:$0xf] %v806
  %935 = vst [vmem:[%s2 + $0x7c] sm:$0xf] %v807
  %936 = vst [vmem:[%s2 + $0x80] sm:$0xf] %v808
  %937 = vst [vmem:[%s2 + $0x84] sm:$0xf] %v809
  %938 = vst [vmem:[%s2 + $0x88] sm:$0xf] %v810
  %939 = vst [vmem:[%s2 + $0x8c] sm:$0xf] %v811
  %940 = vst [vmem:[%s2 + $0x90] sm:$0xf] %v812
  %941 = vst [vmem:[%s2 + $0x94] sm:$0xf] %v813
  %942 = vst [vmem:[%s2 + $0x98] sm:$0xf] %v814
  %943 = vst [vmem:[%s2 + $0x9c] sm:$0xf] %v815
  %944 = vst [vmem:[%s2 + $0xa0] sm:$0xf] %v816
  %945 = vst [vmem:[%s2 + $0xa4] sm:$0xf] %v817
  %946 = vst [vmem:[%s2 + $0xa8] sm:$0xf] %v818
  %947 = vst [vmem:[%s2 + $0xac] sm:$0xf] %v819
  %948 = vst [vmem:[%s2 + $0xb0] sm:$0xf] %v820
  %949 = vst [vmem:[%s2 + $0xb4] sm:$0xf] %v821
  %950 = vst [vmem:[%s2 + $0xb8] sm:$0xf] %v822
  %951 = vst [vmem:[%s2 + $0xbc] sm:$0xf] %v823
  %952 = vst [vmem:[%s2 + $0xc0] sm:$0xf] %v824
  %953 = vst [vmem:[%s2 + $0xc4] sm:$0xf] %v825
  %954 = vst [vmem:[%s2 + $0xc8] sm:$0xf] %v826
  %955 = vst [vmem:[%s2 + $0xcc] sm:$0xf] %v827
  %956 = vst [vmem:[%s2 + $0xd0] sm:$0xf] %v828
  %957 = vst [vmem:[%s2 + $0xd4] sm:$0xf] %v829
  %958 = vst [vmem:[%s2 + $0xd8] sm:$0xf] %v830
  %959 = vst [vmem:[%s2 + $0xdc] sm:$0xf] %v831
  %960 = vst [vmem:[%s2 + $0xe0] sm:$0xf] %v832
  %961 = vst [vmem:[%s2 + $0xe4] sm:$0xf] %v833
  %962 = vst [vmem:[%s2 + $0xe8] sm:$0xf] %v834
  %963 = vst [vmem:[%s2 + $0xec] sm:$0xf] %v835
  %964 = vst [vmem:[%s2 + $0xf0] sm:$0xf] %v836
  %965 = vst [vmem:[%s2 + $0xf4] sm:$0xf] %v837
  %966 = vst [vmem:[%s2 + $0xf8] sm:$0xf] %v838
  %967 = vst [vmem:[%s2 + $0xfc] sm:$0xf] %v839
  %968 = vst [vmem:[%s3] sm:$0xff] 0.0
  %v969 = vadd.f32 %v394, %v397
  %v970 = vadd.f32 %v969, %v402
  %v971 = vadd.f32 %v970, %v405
  %v972 = vadd.f32 %v971, %v410
  %v973 = vadd.f32 %v972, %v413
  %v974 = vadd.f32 %v973, %v418
  %v975 = vadd.f32 %v974, %v421
  %v976 = vadd.f32 %v975, %v426
  %v977 = vadd.f32 %v976, %v429
  %v978 = vadd.f32 %v977, %v434
  %v979 = vadd.f32 %v978, %v437
  %v980 = vadd.f32 %v979, %v442
  %v981 = vadd.f32 %v980, %v445
  %v982 = vadd.f32 %v981, %v450
  %v983 = vadd.f32 %v982, %v453
  %v984 = vadd.f32 %v983, %v458
  %v985 = vadd.f32 %v984, %v461
  %v986 = vadd.f32 %v985, %v466
  %v987 = vadd.f32 %v986, %v469
  %v988 = vadd.f32 %v987, %v474
  %v989 = vadd.f32 %v988, %v477
  %v990 = vadd.f32 %v989, %v482
  %v991 = vadd.f32 %v990, %v485
  %v992 = vadd.f32 %v991, %v490
  %v993 = vadd.f32 %v992, %v493
  %v994 = vadd.f32 %v993, %v498
  %v995 = vadd.f32 %v994, %v501
  %v996 = vadd.f32 %v995, %v506
  %v997 = vadd.f32 %v996, %v509
  %v998 = vadd.f32 %v997, %v514
  %v999 = vadd.f32 %v998, %v517
  %v1000 = vadd.f32 %v999, %v522
  %v1001 = vadd.f32 %v1000, %v525
  %v1002 = vadd.f32 %v1001, %v530
  %v1003 = vadd.f32 %v1002, %v533
  %v1004 = vadd.f32 %v1003, %v538
  %v1005 = vadd.f32 %v1004, %v541
  %v1006 = vadd.f32 %v1005, %v546
  %v1007 = vadd.f32 %v1006, %v549
  %v1008 = vadd.f32 %v1007, %v554
  %v1009 = vadd.f32 %v1008, %v557
  %v1010 = vadd.f32 %v1009, %v562
  %v1011 = vadd.f32 %v1010, %v565
  %v1012 = vadd.f32 %v1011, %v570
  %v1013 = vadd.f32 %v1012, %v573
  %v1014 = vadd.f32 %v1013, %v578
  %v1015 = vadd.f32 %v1014, %v581
  %v1016 = vadd.f32 %v1015, %v586
  %v1017 = vadd.f32 %v1016, %v589
  %v1018 = vadd.f32 %v1017, %v594
  %v1019 = vadd.f32 %v1018, %v597
  %v1020 = vadd.f32 %v1019, %v602
  %v1021 = vadd.f32 %v1020, %v605
  %v1022 = vadd.f32 %v1021, %v610
  %v1023 = vadd.f32 %v1022, %v613
  %v1024 = vadd.f32 %v1023, %v618
  %v1025 = vadd.f32 %v1024, %v621
  %v1026 = vadd.f32 %v1025, %v626
  %v1027 = vadd.f32 %v1026, %v629
  %v1028 = vadd.f32 %v1027, %v634
  %v1029 = vadd.f32 %v1028, %v637
  %v1030 = vadd.f32 %v1029, %v642
  %v1031 = vadd.f32 %v1030, %v645
  %v1032 = vrot.slane %v1031, 4
  %v1033 = vadd.f32 %v1031, %v1032
  %v1034 = vrot.slane %v1033, 2
  %v1035 = vadd.f32 %v1033, %v1034
  %v1036 = vrot.slane %v1035, 1
  %v1037 = vadd.f32 %v1035, %v1036
  %1038 = vst [vmem:[%s3] sm:$0x1] %v1037
  %v1039 = vmul.f32 %v394, %v394
  %v1040 = vmul.f32 %v397, %v397
  %v1041 = vmul.f32 %v402, %v402
  %v1042 = vmul.f32 %v405, %v405
  %v1043 = vmul.f32 %v410, %v410
  %v1044 = vmul.f32 %v413, %v413
  %v1045 = vmul.f32 %v418, %v418
  %v1046 = vmul.f32 %v421, %v421
  %v1047 = vmul.f32 %v426, %v426
  %v1048 = vmul.f32 %v429, %v429
  %v1049 = vmul.f32 %v434, %v434
  %v1050 = vmul.f32 %v437, %v437
  %v1051 = vmul.f32 %v442, %v442
  %v1052 = vmul.f32 %v445, %v445
  %v1053 = vmul.f32 %v450, %v450
  %v1054 = vmul.f32 %v453, %v453
  %v1055 = vmul.f32 %v458, %v458
  %v1056 = vmul.f32 %v461, %v461
  %v1057 = vmul.f32 %v466, %v466
  %v1058 = vmul.f32 %v469, %v469
  %v1059 = vmul.f32 %v474, %v474
  %v1060 = vmul.f32 %v477, %v477
  %v1061 = vmul.f32 %v482, %v482
  %v1062 = vmul.f32 %v485, %v485
  %v1063 = vmul.f32 %v490, %v490
  %v1064 = vmul.f32 %v493, %v493
  %v1065 = vmul.f32 %v498, %v498
  %v1066 = vmul.f32 %v501, %v501
  %v1067 = vmul.f32 %v506, %v506
  %v1068 = vmul.f32 %v509, %v509
  %v1069 = vmul.f32 %v514, %v514
  %v1070 = vmul.f32 %v517, %v517
  %v1071 = vmul.f32 %v522, %v522
  %v1072 = vmul.f32 %v525, %v525
  %v1073 = vmul.f32 %v530, %v530
  %v1074 = vmul.f32 %v533, %v533
  %v1075 = vmul.f32 %v538, %v538
  %v1076 = vmul.f32 %v541, %v541
  %v1077 = vmul.f32 %v546, %v546
  %v1078 = vmul.f32 %v549, %v549
  %v1079 = vmul.f32 %v554, %v554
  %v1080 = vmul.f32 %v557, %v557
  %v1081 = vmul.f32 %v562, %v562
  %v1082 = vmul.f32 %v565, %v565
  %v1083 = vmul.f32 %v570, %v570
  %v1084 = vmul.f32 %v573, %v573
  %v1085 = vmul.f32 %v578, %v578
  %v1086 = vmul.f32 %v581, %v581
  %v1087 = vmul.f32 %v586, %v586
  %v1088 = vmul.f32 %v589, %v589
  %v1089 = vmul.f32 %v594, %v594
  %v1090 = vmul.f32 %v597, %v597
  %v1091 = vmul.f32 %v602, %v602
  %v1092 = vmul.f32 %v605, %v605
  %v1093 = vmul.f32 %v610, %v610
  %v1094 = vmul.f32 %v613, %v613
  %v1095 = vmul.f32 %v618, %v618
  %v1096 = vmul.f32 %v621, %v621
  %v1097 = vmul.f32 %v626, %v626
  %v1098 = vmul.f32 %v629, %v629
  %v1099 = vmul.f32 %v634, %v634
  %v1100 = vmul.f32 %v637, %v637
  %v1101 = vmul.f32 %v642, %v642
  %v1102 = vmul.f32 %v645, %v645
  %v1103 = vadd.f32 %v1039, %v1040
  %v1104 = vadd.f32 %v1103, %v1041
  %v1105 = vadd.f32 %v1104, %v1042
  %v1106 = vadd.f32 %v1105, %v1043
  %v1107 = vadd.f32 %v1106, %v1044
  %v1108 = vadd.f32 %v1107, %v1045
  %v1109 = vadd.f32 %v1108, %v1046
  %v1110 = vadd.f32 %v1109, %v1047
  %v1111 = vadd.f32 %v1110, %v1048
  %v1112 = vadd.f32 %v1111, %v1049
  %v1113 = vadd.f32 %v1112, %v1050
  %v1114 = vadd.f32 %v1113, %v1051
  %v1115 = vadd.f32 %v1114, %v1052
  %v1116 = vadd.f32 %v1115, %v1053
  %v1117 = vadd.f32 %v1116, %v1054
  %v1118 = vadd.f32 %v1117, %v1055
  %v1119 = vadd.f32 %v1118, %v1056
  %v1120 = vadd.f32 %v1119, %v1057
  %v1121 = vadd.f32 %v1120, %v1058
  %v1122 = vadd.f32 %v1121, %v1059
  %v1123 = vadd.f32 %v1122, %v1060
  %v1124 = vadd.f32 %v1123, %v1061
  %v1125 = vadd.f32 %v1124, %v1062
  %v1126 = vadd.f32 %v1125, %v1063
  %v1127 = vadd.f32 %v1126, %v1064
  %v1128 = vadd.f32 %v1127, %v1065
  %v1129 = vadd.f32 %v1128, %v1066
  %v1130 = vadd.f32 %v1129, %v1067
  %v1131 = vadd.f32 %v1130, %v1068
  %v1132 = vadd.f32 %v1131, %v1069
  %v1133 = vadd.f32 %v1132, %v1070
  %v1134 = vadd.f32 %v1133, %v1071
  %v1135 = vadd.f32 %v1134, %v1072
  %v1136 = vadd.f32 %v1135, %v1073
  %v1137 = vadd.f32 %v1136, %v1074
  %v1138 = vadd.f32 %v1137, %v1075
  %v1139 = vadd.f32 %v1138, %v1076
  %v1140 = vadd.f32 %v1139, %v1077
  %v1141 = vadd.f32 %v1140, %v1078
  %v1142 = vadd.f32 %v1141, %v1079
  %v1143 = vadd.f32 %v1142, %v1080
  %v1144 = vadd.f32 %v1143, %v1081
  %v1145 = vadd.f32 %v1144, %v1082
  %v1146 = vadd.f32 %v1145, %v1083
  %v1147 = vadd.f32 %v1146, %v1084
  %v1148 = vadd.f32 %v1147, %v1085
  %v1149 = vadd.f32 %v1148, %v1086
  %v1150 = vadd.f32 %v1149, %v1087
  %v1151 = vadd.f32 %v1150, %v1088
  %v1152 = vadd.f32 %v1151, %v1089
  %v1153 = vadd.f32 %v1152, %v1090
  %v1154 = vadd.f32 %v1153, %v1091
  %v1155 = vadd.f32 %v1154, %v1092
  %v1156 = vadd.f32 %v1155, %v1093
  %v1157 = vadd.f32 %v1156, %v1094
  %v1158 = vadd.f32 %v1157, %v1095
  %v1159 = vadd.f32 %v1158, %v1096
  %v1160 = vadd.f32 %v1159, %v1097
  %v1161 = vadd.f32 %v1160, %v1098
  %v1162 = vadd.f32 %v1161, %v1099
  %v1163 = vadd.f32 %v1162, %v1100
  %v1164 = vadd.f32 %v1163, %v1101
  %v1165 = vadd.f32 %v1164, %v1102
  %v1166 = vrot.slane %v1165, 4
  %v1167 = vadd.f32 %v1165, %v1166
  %v1168 = vrot.slane %v1167, 2
  %v1169 = vadd.f32 %v1167, %v1168
  %v1170 = vrot.slane %v1169, 1
  %v1171 = vadd.f32 %v1169, %v1170
  %1172 = vst [vmem:[%s3 + $0x1] sm:$0x1] %v1171
  // Predicated region
  $region10: #{conv_block_forward.2} parent=0 // pred_check
    _
  $region11: #{conv_block_forward.2} parent=0 // pred_check_branch
    %1174 = sbr.rel (0) target = $region13
  $region12: #{conv_block_forward.2} parent=0 // pred_region
    _
  $region13: #{conv_block_forward.2} parent=0 // pred_fallthru
    _
  // Predicated region
  $region14: #{conv_block_forward.2} parent=0 // pred_check
    _
  $region15: #{conv_block_forward.2} parent=0 // pred_check_branch
    %1176 = sbr.rel (0) target = $region17
  $region16: #{conv_block_forward.2} parent=0 // pred_region
    _
  $region17: #{conv_block_forward.2} parent=0 // pred_fallthru
    _
  // Predicated region
  $region18: #{conv_block_forward.2} parent=0 // pred_check
    _
  $region19: #{conv_block_forward.2} parent=0 // pred_check_branch
    %1178 = sbr.rel (0) target = $region21
  $region20: #{conv_block_forward.2} parent=0 // pred_region
    _
  $region21: #{conv_block_forward.2} parent=0 // pred_fallthru
    _
  // Predicated region
  $region22: #{conv_block_forward.2} parent=0 // pred_check
    _
  $region23: #{conv_block_forward.2} parent=0 // pred_check_branch
    %1180 = sbr.rel (0) target = $region25
  $region24: #{conv_block_forward.2} parent=0 // pred_region
    _
  $region25: #{conv_block_forward.2} parent=0 // pred_fallthru
    _

</llo_original>
